<compile_context>
chip_gen: v7x
topology: tpu7x:2x2x1
jax: 0.10.0
libtpu: 0.0.40
codegen_flags: <defaults>
</compile_context>

<pallas_src>
from functools import partial

import jax
import jax.numpy as jnp
from jax.experimental import pallas as pl
from jax.experimental.pallas import tpu as pltpu

LANES = 128            # vreg lane width
MAX_TILE_ROWS = 512    # packed rows per grid step (512 rows * pack=4 -> 2048 nodes)


def _round_up(x, m):
    return (x + m - 1) // m * m


def _choose_tile_rows(n_rows):
    # Big tiles amortize per-step pipeline overhead; keep >= 2 grid steps when
    # possible so v7x's two TensorCores both get work on the "parallel" axis.
    half = -(-n_rows // 2)
    return max(8, min(MAX_TILE_ROWS, _round_up(half, 8)))


# ---------------------------------------------------------------------------
# Kernel
# ---------------------------------------------------------------------------
def _nonleaf_kernel(*refs, has_left):
    if has_left:
        (radius_ref, right_ref, left_ref,
         w1_ref, b1_ref, w2_ref, b2_ref,
         wr_ref, wl_ref, bctx_ref,
         wer_ref, wec_ref, be_ref, out_ref) = refs
    else:
        (radius_ref, right_ref,
         w1_ref, b1_ref, w2_ref, b2_ref,
         wr_ref, bctx_ref,
         wer_ref, wec_ref, be_ref, out_ref) = refs
        left_ref = wl_ref = None

    f32 = jnp.float32
    bf16 = jnp.bfloat16

    # --- radius branch: l1 -> tanh -> l2 -> tanh ----------------------------
    # TODO(synk): the K=4-per-node l1 matmul could be done as VPU broadcast-FMAs
    # to free an MXU push; left on the MXU since it is not the saturating unit.
    h = jnp.dot(radius_ref[...], w1_ref[...],
                preferred_element_type=f32) + b1_ref[...]
    h = jnp.tanh(h)                                           # f32 (v5e-safe)
    r = jnp.dot(h.astype(bf16), w2_ref[...],
                preferred_element_type=f32) + b2_ref[...]
    r = jnp.tanh(r)                                           # (TB, FP) f32

    # --- context branch: two dots accumulate, no concat ----------------------
    ctx = jnp.dot(right_ref[...], wr_ref[...], preferred_element_type=f32)
    if has_left:
        ctx = ctx + jnp.dot(left_ref[...], wl_ref[...],
                            preferred_element_type=f32)
    ctx = jnp.tanh(ctx + bctx_ref[...])                       # (TB, FP) f32

    # --- encoder(cat([r, ctx])) == r @ we[:F] + ctx @ we[F:] -----------------
    feat = jnp.dot(r.astype(bf16), wer_ref[...], preferred_element_type=f32)
    feat = feat + jnp.dot(ctx.astype(bf16), wec_ref[...],
                          preferred_element_type=f32)
    out_ref[...] = jnp.tanh(feat + be_ref[...])


# ---------------------------------------------------------------------------
# Parameters
# ---------------------------------------------------------------------------
def init_params(key, feature_size, hidden_size):
    """Deterministic init mimicking nn.Linear (uniform +-1/sqrt(fan_in)).

    Weights stored as (in_features, out_features); biases as (1, out).
    """
    def linear(key, fan_in, fan_out):
        kw, kb = jax.random.split(key)
        bound = 1.0 / jnp.sqrt(float(fan_in))
        w = jax.random.uniform(kw, (fan_in, fan_out), jnp.float32, -bound, bound)
        b = jax.random.uniform(kb, (1, fan_out), jnp.float32, -bound, bound)
        return w, b

    k1, k2, kl, kr, ke = jax.random.split(key, 5)
    w1, b1 = linear(k1, 4, hidden_size)                  # l1
    w2, b2 = linear(k2, hidden_size, feature_size)       # l2
    wl, bl = linear(kl, feature_size, feature_size)      # left
    wr, br = linear(kr, feature_size, feature_size)      # right
    we, be = linear(ke, 2 * feature_size, feature_size)  # encoder (2F -> F)
    return dict(w1=w1, b1=b1, w2=w2, b2=b2, wl=wl, bl=bl,
                wr=wr, br=br, we=we, be=be)


def pack_params(params, mxu_dtype=jnp.bfloat16):
    """Pack per-node weights into the lane-dense layout the kernel consumes.

    If F divides 128, `pack = 128 // F` nodes share one 128-lane row and every
    per-node weight becomes block-diagonal kron(I_pack, W); otherwise pack=1
    and feature columns are zero-padded to a multiple of 128.
    MXU weights are bf16; biases stay f32 (added to f32 accumulators).
    """
    f = params["wr"].shape[0]
    hid = params["w1"].shape[1]
    pack = LANES // f if (f < LANES and LANES % f == 0) else 1
    fw = f * pack                       # packed (unpadded) feature width / row
    fp = _round_up(fw, LANES)           # lane-dense output width / row

    eye = jnp.eye(pack, dtype=jnp.float32)

    def bd(w):                          # block-diagonal over `pack` nodes
        return jnp.kron(eye, w)

    def pad_cols(w):
        return jnp.pad(w, ((0, 0), (0, fp - w.shape[1])))

    def pad_rows_cols(w):
        return jnp.pad(w, ((0, fp - w.shape[0]), (0, fp - w.shape[1])))

    def tile_bias(b):                   # (1, f) -> (1, fp), f32
        return pad_cols(jnp.tile(b, (1, pack))).astype(jnp.float32)

    we = params["we"]
    return dict(
        f=f, pack=pack, fw=fw, fp=fp, hid=hid,
        w1=bd(params["w1"]).astype(mxu_dtype),                    # (4p, Hp)
        b1=jnp.tile(params["b1"], (1, pack)).astype(jnp.float32), # (1, Hp)
        w2=pad_cols(bd(params["w2"])).astype(mxu_dtype),          # (Hp, fp)
        b2=tile_bias(params["b2"]),
        wr=pad_cols(bd(params["wr"])).astype(mxu_dtype),          # (fw, fp)
        wl=pad_cols(bd(params["wl"])).astype(mxu_dtype),          # (fw, fp)
        bctx_l=tile_bias(params["br"] + params["bl"]),            # has_left path
        bctx_n=tile_bias(params["br"]),                           # no-left path
        we_r=pad_rows_cols(bd(we[:f])).astype(mxu_dtype),         # (fp, fp)
        we_c=pad_rows_cols(bd(we[f:])).astype(mxu_dtype),         # (fp, fp)
        be=tile_bias(params["be"]),
    )


# ---------------------------------------------------------------------------
# pallas_call wrapper
# ---------------------------------------------------------------------------
@partial(jax.jit, static_argnames=("tb_rows", "has_left"))
def _forward(radius, right, left,
             w1, b1, w2, b2, wr, wl, bctx, we_r, we_c, be,
             *, tb_rows, has_left):
    n_rows = radius.shape[0]
    fp = we_r.shape[1]

    row = lambda i: (i, 0)       # streamed activation tiles
    const = lambda i: (0, 0)     # weights: DMA once, stay VMEM-resident

    act_arrays = [radius, right] + ([left] if has_left else [])
    act_specs = [pl.BlockSpec((tb_rows, a.shape[1]), row) for a in act_arrays]

    weights = ([w1, b1, w2, b2, wr]
               + ([wl] if has_left else [])
               + [bctx, we_r, we_c, be])
    weight_specs = [pl.BlockSpec(w.shape, const) for w in weights]

    return pl.pallas_call(
        partial(_nonleaf_kernel, has_left=has_left),
        out_shape=jax.ShapeDtypeStruct((n_rows, fp), jnp.float32),
        grid=(n_rows // tb_rows,),
        in_specs=act_specs + weight_specs,
        out_specs=pl.BlockSpec((tb_rows, fp), row),
        compiler_params=pltpu.CompilerParams(
            dimension_semantics=("parallel",)),
    )(*(act_arrays + weights))


def nonleaf_encoder(radius, left_input, right_input, packed):
    """radius: (N, 4) or (4,); left_input: (N, F) or None; right_input: (N, F)."""
    radius = jnp.asarray(radius, jnp.float32).reshape(-1, 4)
    right_input = jnp.asarray(right_input, jnp.float32)
    n = right_input.shape[0]
    assert radius.shape[0] == n
    f, pack, fp = packed["f"], packed["pack"], packed["fp"]
    has_left = left_input is not None

    n_rows = -(-n // pack)
    tb_rows = _choose_tile_rows(n_rows)
    n_rows_pad = _round_up(n_rows, tb_rows)
    n_pad = n_rows_pad * pack

    def prep(x, per_node_w):
        x = jnp.pad(x, ((0, n_pad - n), (0, 0)))
        # pack `pack` consecutive nodes into one lane-dense row; bf16 for MXU/DMA
        return x.reshape(n_rows_pad, per_node_w * pack).astype(jnp.bfloat16)

    radius_p = prep(radius, 4)
    right_p = prep(right_input, f)
    left_p = (prep(jnp.asarray(left_input, jnp.float32), f)
              if has_left else None)

    out = _forward(
        radius_p, right_p, left_p,
        packed["w1"], packed["b1"], packed["w2"], packed["b2"],
        packed["wr"], packed["wl"] if has_left else None,
        packed["bctx_l"] if has_left else packed["bctx_n"],
        packed["we_r"], packed["we_c"], packed["be"],
        tb_rows=tb_rows, has_left=has_left)

    # each output row holds `pack` nodes of width fp // pack; unpack and slice
    out = out.reshape(n_rows_pad * pack, fp // pack)
    return out[:n, :f]


def nonleaf_encoder_ref(radius, left_input, right_input, params):
    """Pure-JAX f32 reference of the PyTorch forward (row-wise over N nodes)."""
    radius = jnp.asarray(radius, jnp.float32).reshape(-1, 4)
    r = jnp.tanh(radius @ params["w1"] + params["b1"])
    r = jnp.tanh(r @ params["w2"] + params["b2"])
    ctx = right_input @ params["wr"] + params["br"]
    if left_input is not None:
        ctx = ctx + left_input @ params["wl"] + params["bl"]
    ctx = jnp.tanh(ctx)
    feat = jnp.concatenate([r, ctx], axis=1) @ params["we"] + params["be"]
    return jnp.tanh(feat)


if __name__ == "__main__":
    feature_size = 32
    hidden_size = 32
    n_nodes = 200          # not a multiple of (tile * pack) -> exercises padding

    key = jax.random.PRNGKey(0)
    kp, kr, kl, krt = jax.random.split(key, 4)

    params = init_params(kp, feature_size, hidden_size)
    packed = pack_params(params)

    radius = jax.random.normal(kr, (n_nodes, 4), jnp.float32)
    left_input = jax.random.normal(kl, (n_nodes, feature_size), jnp.float32)
    right_input = jax.random.normal(krt, (n_nodes, feature_size), jnp.float32)

    TOL = 5e-2  # bf16 MXU operands vs f32 reference

    # batched, has_left path
    out = jax.block_until_ready(
        nonleaf_encoder(radius, left_input, right_input, packed))
    ref = nonleaf_encoder_ref(radius, left_input, right_input, params)
    assert out.shape == (n_nodes, feature_size)
    assert jnp.max(jnp.abs(out - ref)) < TOL, "mismatch vs reference"

    # batched, left_input=None path (different trace: no left operand/weight)
    out_nl = jax.block_until_ready(
        nonleaf_encoder(radius, None, right_input, packed))
    ref_nl = nonleaf_encoder_ref(radius, None, right_input, params)
    assert jnp.max(jnp.abs(out_nl - ref_nl)) < TOL, "mismatch (no-left) vs reference"

    # single-node path, matching the original module's (1, 4) radius usage
    out1 = jax.block_until_ready(
        nonleaf_encoder(radius[0], left_input[:1], right_input[:1], packed))
    assert jnp.max(jnp.abs(out1 - ref[:1])) < TOL, "mismatch (single node)"

    print("KERNEL_OK")
</pallas_src>

<mosaic_0001>
module attributes {stable_mosaic.version = 11 : i64} {
  func.func @_nonleaf_kernel(%arg0: i32, %arg1: memref<32x16xbf16, #tpu.memory_space<vmem>>, %arg2: memref<32x128xbf16, #tpu.memory_space<vmem>>, %arg3: memref<32x128xbf16, #tpu.memory_space<vmem>>, %arg4: memref<16x128xbf16, #tpu.memory_space<vmem>>, %arg5: memref<1x128xf32, #tpu.memory_space<vmem>>, %arg6: memref<128x128xbf16, #tpu.memory_space<vmem>>, %arg7: memref<1x128xf32, #tpu.memory_space<vmem>>, %arg8: memref<128x128xbf16, #tpu.memory_space<vmem>>, %arg9: memref<128x128xbf16, #tpu.memory_space<vmem>>, %arg10: memref<1x128xf32, #tpu.memory_space<vmem>>, %arg11: memref<128x128xbf16, #tpu.memory_space<vmem>>, %arg12: memref<128x128xbf16, #tpu.memory_space<vmem>>, %arg13: memref<1x128xf32, #tpu.memory_space<vmem>>, %arg14: memref<32x128xf32, #tpu.memory_space<vmem>>) attributes {dimension_semantics = [#tpu.dimension_semantics<parallel>], iteration_bounds = array<i64: 2>, scalar_prefetch = 0 : i64, scratch_operands = 0 : i64, tpu.core_type = #tpu.core_type<tc>, window_params = [{transform_indices = @transform_0, window_bounds = array<i64: 32, 16>}, {transform_indices = @transform_1, window_bounds = array<i64: 32, 128>}, {transform_indices = @transform_2, window_bounds = array<i64: 32, 128>}, {pipeline_mode = #tpu.pipeline_mode<synchronous>, transform_indices = @transform_3, window_bounds = array<i64: 16, 128>}, {pipeline_mode = #tpu.pipeline_mode<synchronous>, transform_indices = @transform_4, window_bounds = array<i64: 1, 128>}, {pipeline_mode = #tpu.pipeline_mode<synchronous>, transform_indices = @transform_5, window_bounds = array<i64: 128, 128>}, {pipeline_mode = #tpu.pipeline_mode<synchronous>, transform_indices = @transform_6, window_bounds = array<i64: 1, 128>}, {pipeline_mode = #tpu.pipeline_mode<synchronous>, transform_indices = @transform_7, window_bounds = array<i64: 128, 128>}, {pipeline_mode = #tpu.pipeline_mode<synchronous>, transform_indices = @transform_8, window_bounds = array<i64: 128, 128>}, {pipeline_mode = #tpu.pipeline_mode<synchronous>, transform_indices = @transform_9, window_bounds = array<i64: 1, 128>}, {pipeline_mode = #tpu.pipeline_mode<synchronous>, transform_indices = @transform_10, window_bounds = array<i64: 128, 128>}, {pipeline_mode = #tpu.pipeline_mode<synchronous>, transform_indices = @transform_11, window_bounds = array<i64: 128, 128>}, {pipeline_mode = #tpu.pipeline_mode<synchronous>, transform_indices = @transform_12, window_bounds = array<i64: 1, 128>}, {transform_indices = @transform_13, window_bounds = array<i64: 32, 128>}]} {
    %c0 = arith.constant 0 : index
    %c0_0 = arith.constant 0 : index
    %0 = vector.load %arg1[%c0, %c0_0] : memref<32x16xbf16, #tpu.memory_space<vmem>>, vector<32x16xbf16>
    %c0_1 = arith.constant 0 : index
    %c0_2 = arith.constant 0 : index
    %1 = vector.load %arg4[%c0_1, %c0_2] : memref<16x128xbf16, #tpu.memory_space<vmem>>, vector<16x128xbf16>
    %cst = arith.constant dense<0.000000e+00> : vector<32x128xf32>
    %2 = tpu.matmul %0, %1, %cst {dimension_numbers = #tpu.dot_dimension_numbers<[1], [0], [0], [1], [0, 0, 1, 1], [], []>} : vector<32x16xbf16>, vector<16x128xbf16>, vector<32x128xf32> -> vector<32x128xf32>
    %c0_3 = arith.constant 0 : index
    %c0_4 = arith.constant 0 : index
    %3 = vector.load %arg5[%c0_3, %c0_4] : memref<1x128xf32, #tpu.memory_space<vmem>>, vector<1x128xf32>
    %4 = vector.broadcast %3 : vector<1x128xf32> to vector<32x128xf32>
    %5 = arith.addf %2, %4 : vector<32x128xf32>
    %6 = math.tanh %5 : vector<32x128xf32>
    %7 = arith.truncf %6 : vector<32x128xf32> to vector<32x128xbf16>
    %c0_5 = arith.constant 0 : index
    %c0_6 = arith.constant 0 : index
    %8 = vector.load %arg6[%c0_5, %c0_6] : memref<128x128xbf16, #tpu.memory_space<vmem>>, vector<128x128xbf16>
    %cst_7 = arith.constant dense<0.000000e+00> : vector<32x128xf32>
    %9 = tpu.matmul %7, %8, %cst_7 {dimension_numbers = #tpu.dot_dimension_numbers<[1], [0], [0], [1], [0, 0, 1, 1], [], []>} : vector<32x128xbf16>, vector<128x128xbf16>, vector<32x128xf32> -> vector<32x128xf32>
    %c0_8 = arith.constant 0 : index
    %c0_9 = arith.constant 0 : index
    %10 = vector.load %arg7[%c0_8, %c0_9] : memref<1x128xf32, #tpu.memory_space<vmem>>, vector<1x128xf32>
    %11 = vector.broadcast %10 : vector<1x128xf32> to vector<32x128xf32>
    %12 = arith.addf %9, %11 : vector<32x128xf32>
    %13 = math.tanh %12 : vector<32x128xf32>
    %c0_10 = arith.constant 0 : index
    %c0_11 = arith.constant 0 : index
    %14 = vector.load %arg2[%c0_10, %c0_11] : memref<32x128xbf16, #tpu.memory_space<vmem>>, vector<32x128xbf16>
    %c0_12 = arith.constant 0 : index
    %c0_13 = arith.constant 0 : index
    %15 = vector.load %arg8[%c0_12, %c0_13] : memref<128x128xbf16, #tpu.memory_space<vmem>>, vector<128x128xbf16>
    %cst_14 = arith.constant dense<0.000000e+00> : vector<32x128xf32>
    %16 = tpu.matmul %14, %15, %cst_14 {dimension_numbers = #tpu.dot_dimension_numbers<[1], [0], [0], [1], [0, 0, 1, 1], [], []>} : vector<32x128xbf16>, vector<128x128xbf16>, vector<32x128xf32> -> vector<32x128xf32>
    %c0_15 = arith.constant 0 : index
    %c0_16 = arith.constant 0 : index
    %17 = vector.load %arg3[%c0_15, %c0_16] : memref<32x128xbf16, #tpu.memory_space<vmem>>, vector<32x128xbf16>
    %c0_17 = arith.constant 0 : index
    %c0_18 = arith.constant 0 : index
    %18 = vector.load %arg9[%c0_17, %c0_18] : memref<128x128xbf16, #tpu.memory_space<vmem>>, vector<128x128xbf16>
    %cst_19 = arith.constant dense<0.000000e+00> : vector<32x128xf32>
    %19 = tpu.matmul %17, %18, %cst_19 {dimension_numbers = #tpu.dot_dimension_numbers<[1], [0], [0], [1], [0, 0, 1, 1], [], []>} : vector<32x128xbf16>, vector<128x128xbf16>, vector<32x128xf32> -> vector<32x128xf32>
    %20 = arith.addf %16, %19 : vector<32x128xf32>
    %c0_20 = arith.constant 0 : index
    %c0_21 = arith.constant 0 : index
    %21 = vector.load %arg10[%c0_20, %c0_21] : memref<1x128xf32, #tpu.memory_space<vmem>>, vector<1x128xf32>
    %22 = vector.broadcast %21 : vector<1x128xf32> to vector<32x128xf32>
    %23 = arith.addf %20, %22 : vector<32x128xf32>
    %24 = math.tanh %23 : vector<32x128xf32>
    %25 = arith.truncf %13 : vector<32x128xf32> to vector<32x128xbf16>
    %c0_22 = arith.constant 0 : index
    %c0_23 = arith.constant 0 : index
    %26 = vector.load %arg11[%c0_22, %c0_23] : memref<128x128xbf16, #tpu.memory_space<vmem>>, vector<128x128xbf16>
    %cst_24 = arith.constant dense<0.000000e+00> : vector<32x128xf32>
    %27 = tpu.matmul %25, %26, %cst_24 {dimension_numbers = #tpu.dot_dimension_numbers<[1], [0], [0], [1], [0, 0, 1, 1], [], []>} : vector<32x128xbf16>, vector<128x128xbf16>, vector<32x128xf32> -> vector<32x128xf32>
    %28 = arith.truncf %24 : vector<32x128xf32> to vector<32x128xbf16>
    %c0_25 = arith.constant 0 : index
    %c0_26 = arith.constant 0 : index
    %29 = vector.load %arg12[%c0_25, %c0_26] : memref<128x128xbf16, #tpu.memory_space<vmem>>, vector<128x128xbf16>
    %cst_27 = arith.constant dense<0.000000e+00> : vector<32x128xf32>
    %30 = tpu.matmul %28, %29, %cst_27 {dimension_numbers = #tpu.dot_dimension_numbers<[1], [0], [0], [1], [0, 0, 1, 1], [], []>} : vector<32x128xbf16>, vector<128x128xbf16>, vector<32x128xf32> -> vector<32x128xf32>
    %31 = arith.addf %27, %30 : vector<32x128xf32>
    %c0_28 = arith.constant 0 : index
    %c0_29 = arith.constant 0 : index
    %32 = vector.load %arg13[%c0_28, %c0_29] : memref<1x128xf32, #tpu.memory_space<vmem>>, vector<1x128xf32>
    %33 = vector.broadcast %32 : vector<1x128xf32> to vector<32x128xf32>
    %34 = arith.addf %31, %33 : vector<32x128xf32>
    %35 = math.tanh %34 : vector<32x128xf32>
    %c0_30 = arith.constant 0 : index
    %c0_31 = arith.constant 0 : index
    %36 = vector.load %arg14[%c0_30, %c0_31] : memref<32x128xf32, #tpu.memory_space<vmem>>, vector<32x128xf32>
    tpu.vector_store %arg14[%c0_30, %c0_31], %35 {strides = array<i32>} : memref<32x128xf32, #tpu.memory_space<vmem>>, vector<32x128xf32>,
    return
  }
  func.func @transform_0(%arg0: i32) -> (i32, i32) {
    %c0_i32 = arith.constant 0 : i32
    %c0_i32_0 = arith.constant 0 : i32
    return %arg0, %c0_i32 : i32, i32
  }
  func.func @transform_1(%arg0: i32) -> (i32, i32) {
    %c0_i32 = arith.constant 0 : i32
    %c0_i32_0 = arith.constant 0 : i32
    return %arg0, %c0_i32 : i32, i32
  }
  func.func @transform_2(%arg0: i32) -> (i32, i32) {
    %c0_i32 = arith.constant 0 : i32
    %c0_i32_0 = arith.constant 0 : i32
    return %arg0, %c0_i32 : i32, i32
  }
  func.func @transform_3(%arg0: i32) -> (i32, i32) {
    %c0_i32 = arith.constant 0 : i32
    %c0_i32_0 = arith.constant 0 : i32
    %c0_i32_1 = arith.constant 0 : i32
    return %c0_i32, %c0_i32_0 : i32, i32
  }
  func.func @transform_4(%arg0: i32) -> (i32, i32) {
    %c0_i32 = arith.constant 0 : i32
    %c0_i32_0 = arith.constant 0 : i32
    %c0_i32_1 = arith.constant 0 : i32
    return %c0_i32, %c0_i32_0 : i32, i32
  }
  func.func @transform_5(%arg0: i32) -> (i32, i32) {
    %c0_i32 = arith.constant 0 : i32
    %c0_i32_0 = arith.constant 0 : i32
    %c0_i32_1 = arith.constant 0 : i32
    return %c0_i32, %c0_i32_0 : i32, i32
  }
  func.func @transform_6(%arg0: i32) -> (i32, i32) {
    %c0_i32 = arith.constant 0 : i32
    %c0_i32_0 = arith.constant 0 : i32
    %c0_i32_1 = arith.constant 0 : i32
    return %c0_i32, %c0_i32_0 : i32, i32
  }
  func.func @transform_7(%arg0: i32) -> (i32, i32) {
    %c0_i32 = arith.constant 0 : i32
    %c0_i32_0 = arith.constant 0 : i32
    %c0_i32_1 = arith.constant 0 : i32
    return %c0_i32, %c0_i32_0 : i32, i32
  }
  func.func @transform_8(%arg0: i32) -> (i32, i32) {
    %c0_i32 = arith.constant 0 : i32
    %c0_i32_0 = arith.constant 0 : i32
    %c0_i32_1 = arith.constant 0 : i32
    return %c0_i32, %c0_i32_0 : i32, i32
  }
  func.func @transform_9(%arg0: i32) -> (i32, i32) {
    %c0_i32 = arith.constant 0 : i32
    %c0_i32_0 = arith.constant 0 : i32
    %c0_i32_1 = arith.constant 0 : i32
    return %c0_i32, %c0_i32_0 : i32, i32
  }
  func.func @transform_10(%arg0: i32) -> (i32, i32) {
    %c0_i32 = arith.constant 0 : i32
    %c0_i32_0 = arith.constant 0 : i32
    %c0_i32_1 = arith.constant 0 : i32
    return %c0_i32, %c0_i32_0 : i32, i32
  }
  func.func @transform_11(%arg0: i32) -> (i32, i32) {
    %c0_i32 = arith.constant 0 : i32
    %c0_i32_0 = arith.constant 0 : i32
    %c0_i32_1 = arith.constant 0 : i32
    return %c0_i32, %c0_i32_0 : i32, i32
  }
  func.func @transform_12(%arg0: i32) -> (i32, i32) {
    %c0_i32 = arith.constant 0 : i32
    %c0_i32_0 = arith.constant 0 : i32
    %c0_i32_1 = arith.constant 0 : i32
    return %c0_i32, %c0_i32_0 : i32, i32
  }
  func.func @transform_13(%arg0: i32) -> (i32, i32) {
    %c0_i32 = arith.constant 0 : i32
    %c0_i32_0 = arith.constant 0 : i32
    return %arg0, %c0_i32 : i32, i32
  }
}

</mosaic_0001>

<llo_original>
// kernel: _forward.1
$region0: #{_forward.1}
  #allocation0 [shape = 'u32[]', space=smem, size = 0x4, offset = 0x4, fixed_abs, tag = 'smem constant byte address 0x4 - core index']
  #allocation1 [shape = 'u32[144,128]{1,0:T(1,128)}', space=vmem, size = 0x12000, scoped, tag = 'internal scratch']
  %s0 = inlined_call_operand.vmem [shape: bf16[64,16], index: 0, kind: input, shape index: {}]
  %s1 = inlined_call_operand.hbm [shape: bf16[64,128], index: 1, kind: input, shape index: {}]
  %s2 = inlined_call_operand.hbm [shape: bf16[64,128], index: 2, kind: input, shape index: {}]
  %s3 = inlined_call_operand.hbm [shape: bf16[16,128], index: 3, kind: input, shape index: {}]
  %s4 = inlined_call_operand.vmem [shape: f32[1,128], index: 4, kind: input, shape index: {}]
  %s5 = inlined_call_operand.hbm [shape: bf16[128,128], index: 5, kind: input, shape index: {}]
  %s6 = inlined_call_operand.vmem [shape: f32[1,128], index: 6, kind: input, shape index: {}]
  %s7 = inlined_call_operand.vmem [shape: bf16[128,128], index: 7, kind: input, shape index: {}]
  %s8 = inlined_call_operand.hbm [shape: bf16[128,128], index: 8, kind: input, shape index: {}]
  %s9 = inlined_call_operand.vmem [shape: f32[1,128], index: 9, kind: input, shape index: {}]
  %s10 = inlined_call_operand.hbm [shape: bf16[128,128], index: 10, kind: input, shape index: {}]
  %s11 = inlined_call_operand.hbm [shape: bf16[128,128], index: 11, kind: input, shape index: {}]
  %s12 = inlined_call_operand.vmem [shape: f32[1,128], index: 12, kind: input, shape index: {}]
  %s13 = inlined_call_operand.hbm [shape: f32[64,128], index: 13, kind: output, shape index: {}]
  %s14 = sld [smem:[#allocation0]]
  $region113: #{_forward.1} parent=0
    _
  %s16 = ssub.s32 1, %s14
  %s17 = scalar_select 0, %s16, %s14
  $region1: #{_forward.1} parent=0
    #allocation2 [shape = 'u8[16384]{0}', space=vmem, size = 0x4000, scoped, tag = 'input window, operand 1']
    #allocation3 [shape = 's32[2]{0}', space=sflag, size = 0x8, scoped, tag = 'scoped memory for _forward.1']
    #allocation4 [shape = 's32[2]{0}', space=sflag, size = 0x8, scoped, tag = 'scoped memory for _forward.1']
    #allocation5 [shape = 'u8[16384]{0}', space=vmem, size = 0x4000, scoped, tag = 'input window, operand 2']
    #allocation6 [shape = 's32[2]{0}', space=sflag, size = 0x8, scoped, tag = 'scoped memory for _forward.1']
    #allocation7 [shape = 'u8[4096]{0}', space=vmem, size = 0x1000, scoped, tag = 'input window, operand 3, single buffered']
    #allocation8 [shape = 'u8[32768]{0}', space=vmem, size = 0x8000, scoped, tag = 'input window, operand 5, single buffered']
    #allocation9 [shape = 's32[1]{0}', space=sflag, size = 0x4, scoped, tag = 'scoped memory for _forward.1']
    #allocation10 [shape = 'u8[32768]{0}', space=vmem, size = 0x8000, scoped, tag = 'input window, operand 8, single buffered']
    #allocation11 [shape = 'u8[32768]{0}', space=vmem, size = 0x8000, scoped, tag = 'input window, operand 10, single buffered']
    #allocation12 [shape = 's32[1]{0}', space=sflag, size = 0x4, scoped, tag = 'scoped memory for _forward.1']
    #allocation13 [shape = 'u8[32768]{0}', space=vmem, size = 0x8000, scoped, tag = 'input window, operand 11, single buffered']
    #allocation14 [shape = 'u8[32768]{0}', space=vmem, size = 0x8000, scoped, tag = 'output window, operand 0']
    %18 = vsyncpa [#allocation3], 0
    %s19 = scalar_lea.sflag [#allocation3], 1
    %20 = vsyncpa %s19, 0
    %21 = vsyncpa [#allocation6], 0
    %s22 = scalar_lea.sflag [#allocation6], 1
    %23 = vsyncpa %s22, 0
    %24 = vsyncpa [#allocation9], 0
    %25 = vsyncpa [#allocation12], 0
    %26 = vsyncpa [#allocation4], 0
    %s27 = scalar_lea.sflag [#allocation4], 1
    %28 = vsyncpa %s27, 0
    loop: start=0, step=1, limit=4
    $region2: #{_forward.1} parent=1 // loop_pre_header
      _
    $region3: #{_forward.1} parent=1 // loop_header
      %s30 = sphi 0, %s34
      %p31 = scmp.ge.s32.totalorder %s30, 4
      %s40 = sphi 0, %s42
      %s43 = sphi 0, %s40
      %s44 = sphi 0, %s43
      %s60 = sphi 0, %s44
      %s66 = sphi 0, %s68
      %s69 = sphi 0, %s66
      %s70 = sphi 0, %s69
      %s86 = sphi 0, %s70
      %s92 = sphi 0, %s94
      %s95 = sphi 0, %s92
      %s96 = sphi 0, %s95
      %s112 = sphi 0, %s96
      %s116 = sphi 0, %s116
      %s118 = sphi 0, %s116
      %s119 = sphi 0, %s118
      %s133 = sphi 0, %s119
      %s137 = sphi 0, %s137
      %s139 = sphi 0, %s137
      %s140 = sphi 0, %s139
      %s154 = sphi 0, %s140
      %s158 = sphi 0, %s158
      %s160 = sphi 0, %s158
      %s161 = sphi 0, %s160
      %s175 = sphi 0, %s161
      %s179 = sphi 0, %s179
      %s181 = sphi 0, %s179
      %s182 = sphi 0, %s181
      %s196 = sphi 0, %s182
      %s200 = sphi 0, %s200
      %s202 = sphi 0, %s200
      %s203 = sphi 0, %s202
      %s217 = sphi 0, %s203
      %s221 = sphi 0, %s221
      %s223 = sphi 0, %s221
      %s224 = sphi 0, %s223
      %s238 = sphi 0, %s224
      %s242 = sphi 0, %s242
      %s244 = sphi 0, %s242
      %s245 = sphi 0, %s244
      %s259 = sphi 0, %s245
      %s263 = sphi 0, %s263
      %s265 = sphi 0, %s263
      %s266 = sphi 0, %s265
      %s280 = sphi 0, %s266
      %s284 = sphi 0, %s284
      %s286 = sphi 0, %s284
      %s287 = sphi 0, %s286
      %s301 = sphi 0, %s287
      %s305 = sphi 0, %s305
      %s307 = sphi 0, %s305
      %s308 = sphi 0, %s307
      %s322 = sphi 0, %s308
      %s328 = sphi 0, %s330
      %s331 = sphi 0, %s328
      %s332 = sphi 0, %s331
      %s348 = sphi 0, %s332
    $region4: #{_forward.1} parent=1 // loop_header_branch
      %33 = sbr.rel (%p31) target = $region8
    $region5: #{_forward.1} parent=1 // loop_body
      %s35 = ssub.s32 %s30, 1
      %s36 = ssub.s32 %s30, 2
      %s37 = sadd.s32 %s30, 1
      %s38 = ssub.s32 %s30, %s37
      %p39 = scmp.eq.s32.totalorder %s38, 0
      %s41 = sadd.s32 %s40, 1
      %s42 = scalar_select %p39, %s40, %s41
      %p45 = pneg %p39
      %p46 = scmp.eq.s32.totalorder %s30, 1
      %p47 = por %p45, %p46
      %p48 = scmp.ne.s32.totalorder %s40, %s43
      %p49 = scmp.eq.s32.totalorder %s30, 0
      %p50 = por %p48, %p49
      %p51 = scmp.ne.s32.totalorder %s40, %s43
      %p52 = scmp.eq.s32.totalorder %s35, 1
      %p53 = por %p51, %p52
      %p54 = scmp.ne.s32.totalorder %s43, %s44
      %p55 = scmp.eq.s32.totalorder %s35, 0
      %p56 = por %p54, %p55
      %p57 = scmp.ne.s32.totalorder %s43, %s44
      %p58 = scmp.eq.s32.totalorder %s36, 1
      %p59 = por %p57, %p58
      %p61 = scmp.ne.s32.totalorder %s44, %s60
      %p62 = scmp.eq.s32.totalorder %s36, 0
      %p63 = por %p61, %p62
      %s64 = ssub.s32 %s30, %s37
      %p65 = scmp.eq.s32.totalorder %s64, 0
      %s67 = sadd.s32 %s66, 1
      %s68 = scalar_select %p65, %s66, %s67
      %p71 = pneg %p65
      %p72 = scmp.eq.s32.totalorder %s30, 1
      %p73 = por %p71, %p72
      %p74 = scmp.ne.s32.totalorder %s66, %s69
      %p75 = scmp.eq.s32.totalorder %s30, 0
      %p76 = por %p74, %p75
      %p77 = scmp.ne.s32.totalorder %s66, %s69
      %p78 = scmp.eq.s32.totalorder %s35, 1
      %p79 = por %p77, %p78
      %p80 = scmp.ne.s32.totalorder %s69, %s70
      %p81 = scmp.eq.s32.totalorder %s35, 0
      %p82 = por %p80, %p81
      %p83 = scmp.ne.s32.totalorder %s69, %s70
      %p84 = scmp.eq.s32.totalorder %s36, 1
      %p85 = por %p83, %p84
      %p87 = scmp.ne.s32.totalorder %s70, %s86
      %p88 = scmp.eq.s32.totalorder %s36, 0
      %p89 = por %p87, %p88
      %s90 = ssub.s32 %s30, %s37
      %p91 = scmp.eq.s32.totalorder %s90, 0
      %s93 = sadd.s32 %s92, 1
      %s94 = scalar_select %p91, %s92, %s93
      %p97 = pneg %p91
      %p98 = scmp.eq.s32.totalorder %s30, 1
      %p99 = por %p97, %p98
      %p100 = scmp.ne.s32.totalorder %s92, %s95
      %p101 = scmp.eq.s32.totalorder %s30, 0
      %p102 = por %p100, %p101
      %p103 = scmp.ne.s32.totalorder %s92, %s95
      %p104 = scmp.eq.s32.totalorder %s35, 1
      %p105 = por %p103, %p104
      %p106 = scmp.ne.s32.totalorder %s95, %s96
      %p107 = scmp.eq.s32.totalorder %s35, 0
      %p108 = por %p106, %p107
      %p109 = scmp.ne.s32.totalorder %s95, %s96
      %p110 = scmp.eq.s32.totalorder %s36, 1
      %p111 = por %p109, %p110
      %p113 = scmp.ne.s32.totalorder %s96, %s112
      %p114 = scmp.eq.s32.totalorder %s36, 0
      %p115 = por %p113, %p114
      %s117 = sadd.s32 %s116, 1
      %p120 = scmp.eq.s32.totalorder %s30, 1
      %p121 = scmp.ne.s32.totalorder %s116, %s118
      %p122 = scmp.eq.s32.totalorder %s30, 0
      %p123 = por %p121, %p122
      %p124 = scmp.ne.s32.totalorder %s116, %s118
      %p125 = scmp.eq.s32.totalorder %s35, 1
      %p126 = por %p124, %p125
      %p127 = scmp.ne.s32.totalorder %s118, %s119
      %p128 = scmp.eq.s32.totalorder %s35, 0
      %p129 = por %p127, %p128
      %p130 = scmp.ne.s32.totalorder %s118, %s119
      %p131 = scmp.eq.s32.totalorder %s36, 1
      %p132 = por %p130, %p131
      %p134 = scmp.ne.s32.totalorder %s119, %s133
      %p135 = scmp.eq.s32.totalorder %s36, 0
      %p136 = por %p134, %p135
      %s138 = sadd.s32 %s137, 1
      %p141 = scmp.eq.s32.totalorder %s30, 1
      %p142 = scmp.ne.s32.totalorder %s137, %s139
      %p143 = scmp.eq.s32.totalorder %s30, 0
      %p144 = por %p142, %p143
      %p145 = scmp.ne.s32.totalorder %s137, %s139
      %p146 = scmp.eq.s32.totalorder %s35, 1
      %p147 = por %p145, %p146
      %p148 = scmp.ne.s32.totalorder %s139, %s140
      %p149 = scmp.eq.s32.totalorder %s35, 0
      %p150 = por %p148, %p149
      %p151 = scmp.ne.s32.totalorder %s139, %s140
      %p152 = scmp.eq.s32.totalorder %s36, 1
      %p153 = por %p151, %p152
      %p155 = scmp.ne.s32.totalorder %s140, %s154
      %p156 = scmp.eq.s32.totalorder %s36, 0
      %p157 = por %p155, %p156
      %s159 = sadd.s32 %s158, 1
      %p162 = scmp.eq.s32.totalorder %s30, 1
      %p163 = scmp.ne.s32.totalorder %s158, %s160
      %p164 = scmp.eq.s32.totalorder %s30, 0
      %p165 = por %p163, %p164
      %p166 = scmp.ne.s32.totalorder %s158, %s160
      %p167 = scmp.eq.s32.totalorder %s35, 1
      %p168 = por %p166, %p167
      %p169 = scmp.ne.s32.totalorder %s160, %s161
      %p170 = scmp.eq.s32.totalorder %s35, 0
      %p171 = por %p169, %p170
      %p172 = scmp.ne.s32.totalorder %s160, %s161
      %p173 = scmp.eq.s32.totalorder %s36, 1
      %p174 = por %p172, %p173
      %p176 = scmp.ne.s32.totalorder %s161, %s175
      %p177 = scmp.eq.s32.totalorder %s36, 0
      %p178 = por %p176, %p177
      %s180 = sadd.s32 %s179, 1
      %p183 = scmp.eq.s32.totalorder %s30, 1
      %p184 = scmp.ne.s32.totalorder %s179, %s181
      %p185 = scmp.eq.s32.totalorder %s30, 0
      %p186 = por %p184, %p185
      %p187 = scmp.ne.s32.totalorder %s179, %s181
      %p188 = scmp.eq.s32.totalorder %s35, 1
      %p189 = por %p187, %p188
      %p190 = scmp.ne.s32.totalorder %s181, %s182
      %p191 = scmp.eq.s32.totalorder %s35, 0
      %p192 = por %p190, %p191
      %p193 = scmp.ne.s32.totalorder %s181, %s182
      %p194 = scmp.eq.s32.totalorder %s36, 1
      %p195 = por %p193, %p194
      %p197 = scmp.ne.s32.totalorder %s182, %s196
      %p198 = scmp.eq.s32.totalorder %s36, 0
      %p199 = por %p197, %p198
      %s201 = sadd.s32 %s200, 1
      %p204 = scmp.eq.s32.totalorder %s30, 1
      %p205 = scmp.ne.s32.totalorder %s200, %s202
      %p206 = scmp.eq.s32.totalorder %s30, 0
      %p207 = por %p205, %p206
      %p208 = scmp.ne.s32.totalorder %s200, %s202
      %p209 = scmp.eq.s32.totalorder %s35, 1
      %p210 = por %p208, %p209
      %p211 = scmp.ne.s32.totalorder %s202, %s203
      %p212 = scmp.eq.s32.totalorder %s35, 0
      %p213 = por %p211, %p212
      %p214 = scmp.ne.s32.totalorder %s202, %s203
      %p215 = scmp.eq.s32.totalorder %s36, 1
      %p216 = por %p214, %p215
      %p218 = scmp.ne.s32.totalorder %s203, %s217
      %p219 = scmp.eq.s32.totalorder %s36, 0
      %p220 = por %p218, %p219
      %s222 = sadd.s32 %s221, 1
      %p225 = scmp.eq.s32.totalorder %s30, 1
      %p226 = scmp.ne.s32.totalorder %s221, %s223
      %p227 = scmp.eq.s32.totalorder %s30, 0
      %p228 = por %p226, %p227
      %p229 = scmp.ne.s32.totalorder %s221, %s223
      %p230 = scmp.eq.s32.totalorder %s35, 1
      %p231 = por %p229, %p230
      %p232 = scmp.ne.s32.totalorder %s223, %s224
      %p233 = scmp.eq.s32.totalorder %s35, 0
      %p234 = por %p232, %p233
      %p235 = scmp.ne.s32.totalorder %s223, %s224
      %p236 = scmp.eq.s32.totalorder %s36, 1
      %p237 = por %p235, %p236
      %p239 = scmp.ne.s32.totalorder %s224, %s238
      %p240 = scmp.eq.s32.totalorder %s36, 0
      %p241 = por %p239, %p240
      %s243 = sadd.s32 %s242, 1
      %p246 = scmp.eq.s32.totalorder %s30, 1
      %p247 = scmp.ne.s32.totalorder %s242, %s244
      %p248 = scmp.eq.s32.totalorder %s30, 0
      %p249 = por %p247, %p248
      %p250 = scmp.ne.s32.totalorder %s242, %s244
      %p251 = scmp.eq.s32.totalorder %s35, 1
      %p252 = por %p250, %p251
      %p253 = scmp.ne.s32.totalorder %s244, %s245
      %p254 = scmp.eq.s32.totalorder %s35, 0
      %p255 = por %p253, %p254
      %p256 = scmp.ne.s32.totalorder %s244, %s245
      %p257 = scmp.eq.s32.totalorder %s36, 1
      %p258 = por %p256, %p257
      %p260 = scmp.ne.s32.totalorder %s245, %s259
      %p261 = scmp.eq.s32.totalorder %s36, 0
      %p262 = por %p260, %p261
      %s264 = sadd.s32 %s263, 1
      %p267 = scmp.eq.s32.totalorder %s30, 1
      %p268 = scmp.ne.s32.totalorder %s263, %s265
      %p269 = scmp.eq.s32.totalorder %s30, 0
      %p270 = por %p268, %p269
      %p271 = scmp.ne.s32.totalorder %s263, %s265
      %p272 = scmp.eq.s32.totalorder %s35, 1
      %p273 = por %p271, %p272
      %p274 = scmp.ne.s32.totalorder %s265, %s266
      %p275 = scmp.eq.s32.totalorder %s35, 0
      %p276 = por %p274, %p275
      %p277 = scmp.ne.s32.totalorder %s265, %s266
      %p278 = scmp.eq.s32.totalorder %s36, 1
      %p279 = por %p277, %p278
      %p281 = scmp.ne.s32.totalorder %s266, %s280
      %p282 = scmp.eq.s32.totalorder %s36, 0
      %p283 = por %p281, %p282
      %s285 = sadd.s32 %s284, 1
      %p288 = scmp.eq.s32.totalorder %s30, 1
      %p289 = scmp.ne.s32.totalorder %s284, %s286
      %p290 = scmp.eq.s32.totalorder %s30, 0
      %p291 = por %p289, %p290
      %p292 = scmp.ne.s32.totalorder %s284, %s286
      %p293 = scmp.eq.s32.totalorder %s35, 1
      %p294 = por %p292, %p293
      %p295 = scmp.ne.s32.totalorder %s286, %s287
      %p296 = scmp.eq.s32.totalorder %s35, 0
      %p297 = por %p295, %p296
      %p298 = scmp.ne.s32.totalorder %s286, %s287
      %p299 = scmp.eq.s32.totalorder %s36, 1
      %p300 = por %p298, %p299
      %p302 = scmp.ne.s32.totalorder %s287, %s301
      %p303 = scmp.eq.s32.totalorder %s36, 0
      %p304 = por %p302, %p303
      %s306 = sadd.s32 %s305, 1
      %p309 = scmp.eq.s32.totalorder %s30, 1
      %p310 = scmp.ne.s32.totalorder %s305, %s307
      %p311 = scmp.eq.s32.totalorder %s30, 0
      %p312 = por %p310, %p311
      %p313 = scmp.ne.s32.totalorder %s305, %s307
      %p314 = scmp.eq.s32.totalorder %s35, 1
      %p315 = por %p313, %p314
      %p316 = scmp.ne.s32.totalorder %s307, %s308
      %p317 = scmp.eq.s32.totalorder %s35, 0
      %p318 = por %p316, %p317
      %p319 = scmp.ne.s32.totalorder %s307, %s308
      %p320 = scmp.eq.s32.totalorder %s36, 1
      %p321 = por %p319, %p320
      %p323 = scmp.ne.s32.totalorder %s308, %s322
      %p324 = scmp.eq.s32.totalorder %s36, 0
      %p325 = por %p323, %p324
      %s326 = ssub.s32 %s30, %s37
      %p327 = scmp.eq.s32.totalorder %s326, 0
      %s329 = sadd.s32 %s328, 1
      %s330 = scalar_select %p327, %s328, %s329
      %p333 = pneg %p327
      %p334 = scmp.eq.s32.totalorder %s30, 1
      %p335 = por %p333, %p334
      %p336 = scmp.ne.s32.totalorder %s328, %s331
      %p337 = scmp.eq.s32.totalorder %s30, 0
      %p338 = por %p336, %p337
      %p339 = scmp.ne.s32.totalorder %s328, %s331
      %p340 = scmp.eq.s32.totalorder %s35, 1
      %p341 = por %p339, %p340
      %p342 = scmp.ne.s32.totalorder %s331, %s332
      %p343 = scmp.eq.s32.totalorder %s35, 0
      %p344 = por %p342, %p343
      %p345 = scmp.ne.s32.totalorder %s331, %s332
      %p346 = scmp.eq.s32.totalorder %s36, 1
      %p347 = por %p345, %p346
      %p349 = scmp.ne.s32.totalorder %s332, %s348
      %p350 = scmp.eq.s32.totalorder %s36, 0
      %p351 = por %p349, %p350
      %p352 = scmp.le.s32.totalorder 1, %s30
      %p353 = scmp.lt.s32.totalorder %s30, 3
      %p354 = pnand %p352, %p353
      %p355 = pneg %p354
      // Predicated region
      $region9: #{_forward.1} parent=5 // pred_check
        _
      $region10: #{_forward.1} parent=5 // pred_check_branch
        %357 = sbr.rel (%p354) target = $region12
      $region11: #{_forward.1} parent=5 // pred_region
        %s358 = ssub.s32 %s30, 1
        // Predicated region
        $region13: #{_forward.1} parent=11 // pred_check
          %p359 = pneg %p129
        $region14: #{_forward.1} parent=11 // pred_check_branch
          %361 = sbr.rel (%p359) target = $region16
        $region15: #{_forward.1} parent=11 // pred_region
          %s363 = ssub.s32 128, 128
          %364 = vsyncadd [#allocation6], %s363
          %s365 = sshll.u32 [#allocation7], 4
          %s366 = int_to_ptr.vmem [resolvable:$true] %s365
          %371 = dma.hbm_to_vmem [thread:$0]  %s3, 128, %s366, [#allocation6], 64, 64, 4
        $region16: #{_forward.1} parent=11 // pred_fallthru
          _
        // Predicated region
        $region17: #{_forward.1} parent=11 // pred_check
          %p372 = pneg %p150
        $region18: #{_forward.1} parent=11 // pred_check_branch
          %374 = sbr.rel (%p372) target = $region20
        $region19: #{_forward.1} parent=11 // pred_region
          _
        $region20: #{_forward.1} parent=11 // pred_fallthru
          _
        // Predicated region
        $region21: #{_forward.1} parent=11 // pred_check
          %p375 = pneg %p171
        $region22: #{_forward.1} parent=11 // pred_check_branch
          %377 = sbr.rel (%p375) target = $region24
        $region23: #{_forward.1} parent=11 // pred_region
          %s379 = ssub.s32 1024, 1024
          %380 = vsyncadd [#allocation9], %s379
          %s381 = sshll.u32 [#allocation8], 4
          %s382 = int_to_ptr.vmem [resolvable:$true] %s381
          %387 = dma.hbm_to_vmem [thread:$0]  %s5, 1024, %s382, [#allocation9], 64, 64, 4
        $region24: #{_forward.1} parent=11 // pred_fallthru
          _
        // Predicated region
        $region25: #{_forward.1} parent=11 // pred_check
          %p388 = pneg %p192
        $region26: #{_forward.1} parent=11 // pred_check_branch
          %390 = sbr.rel (%p388) target = $region28
        $region27: #{_forward.1} parent=11 // pred_region
          _
        $region28: #{_forward.1} parent=11 // pred_fallthru
          _
        // Predicated region
        $region29: #{_forward.1} parent=11 // pred_check
          %p391 = pneg %p213
        $region30: #{_forward.1} parent=11 // pred_check_branch
          %393 = sbr.rel (%p391) target = $region32
        $region31: #{_forward.1} parent=11 // pred_region
          _
        $region32: #{_forward.1} parent=11 // pred_fallthru
          _
        // Predicated region
        $region33: #{_forward.1} parent=11 // pred_check
          %p394 = pneg %p234
        $region34: #{_forward.1} parent=11 // pred_check_branch
          %396 = sbr.rel (%p394) target = $region36
        $region35: #{_forward.1} parent=11 // pred_region
          %s398 = ssub.s32 1024, 1024
          %399 = vsyncadd [#allocation9], %s398
          %s400 = sshll.u32 [#allocation10], 4
          %s401 = int_to_ptr.vmem [resolvable:$true] %s400
          %406 = dma.hbm_to_vmem [thread:$0]  %s8, 1024, %s401, [#allocation9], 64, 64, 4
        $region36: #{_forward.1} parent=11 // pred_fallthru
          _
        // Predicated region
        $region37: #{_forward.1} parent=11 // pred_check
          %p407 = pneg %p255
        $region38: #{_forward.1} parent=11 // pred_check_branch
          %409 = sbr.rel (%p407) target = $region40
        $region39: #{_forward.1} parent=11 // pred_region
          _
        $region40: #{_forward.1} parent=11 // pred_fallthru
          _
        // Predicated region
        $region41: #{_forward.1} parent=11 // pred_check
          %p410 = pneg %p276
        $region42: #{_forward.1} parent=11 // pred_check_branch
          %412 = sbr.rel (%p410) target = $region44
        $region43: #{_forward.1} parent=11 // pred_region
          %s414 = ssub.s32 1024, 1024
          %415 = vsyncadd [#allocation12], %s414
          %s416 = sshll.u32 [#allocation11], 4
          %s417 = int_to_ptr.vmem [resolvable:$true] %s416
          %422 = dma.hbm_to_vmem [thread:$0]  %s10, 1024, %s417, [#allocation12], 64, 64, 4
        $region44: #{_forward.1} parent=11 // pred_fallthru
          _
        // Predicated region
        $region45: #{_forward.1} parent=11 // pred_check
          %p423 = pneg %p297
        $region46: #{_forward.1} parent=11 // pred_check_branch
          %425 = sbr.rel (%p423) target = $region48
        $region47: #{_forward.1} parent=11 // pred_region
          %s427 = ssub.s32 1024, 1024
          %428 = vsyncadd [#allocation12], %s427
          %s429 = sshll.u32 [#allocation13], 4
          %s430 = int_to_ptr.vmem [resolvable:$true] %s429
          %435 = dma.hbm_to_vmem [thread:$0]  %s11, 1024, %s430, [#allocation12], 64, 64, 4
        $region48: #{_forward.1} parent=11 // pred_fallthru
          _
        // Predicated region
        $region49: #{_forward.1} parent=11 // pred_check
          %p436 = pneg %p318
        $region50: #{_forward.1} parent=11 // pred_check_branch
          %438 = sbr.rel (%p436) target = $region52
        $region51: #{_forward.1} parent=11 // pred_region
          _
        $region52: #{_forward.1} parent=11 // pred_fallthru
          _
      $region12: #{_forward.1} parent=5 // pred_fallthru
        _
      %p439 = scmp.lt.s32.totalorder %s30, 2
      // Predicated region
      $region53: #{_forward.1} parent=5 // pred_check
        %p440 = pneg %p439
      $region54: #{_forward.1} parent=5 // pred_check_branch
        %442 = sbr.rel (%p440) target = $region56
      $region55: #{_forward.1} parent=5 // pred_region
        // Predicated region
        $region57: #{_forward.1} parent=55 // pred_check
          %p443 = pneg %p50
        $region58: #{_forward.1} parent=55 // pred_check_branch
          %445 = sbr.rel (%p443) target = $region60
        $region59: #{_forward.1} parent=55 // pred_region
          %s446 = smul.u32 4, %s30
          %p447 = scmp.lt.s32.totalorder %s446, 7
          %s448 = scalar_select %p447, %s446, 7
          %s449 = smul.addr %s448, 4
          %s450 = scalar_lea.vmem %s0, %s449
          %s451 = smul.u32 4, %s30
        $region60: #{_forward.1} parent=55 // pred_fallthru
          _
        // Predicated region
        $region61: #{_forward.1} parent=55 // pred_check
          %p452 = pneg %p76
        $region62: #{_forward.1} parent=55 // pred_check_branch
          %454 = sbr.rel (%p452) target = $region64
        $region63: #{_forward.1} parent=55 // pred_region
          %s455 = sand.u32 %s66, 1
          %s456 = scalar_lea.sflag [#allocation3], %s455
          %s457 = sand.u32 %s66, 1
          %s458 = smul.addr %s457, 16
          %s459 = scalar_lea.vmem [#allocation2], %s458
          %s460 = smul.u32 4, %s30
          %s462 = ssub.s32 256, 256
          %463 = vsyncadd %s456, %s462
          %s464 = smul.addr %s460, 64
          %s465 = scalar_lea.hbm %s1, %s464
          %s466 = sshll.u32 %s459, 4
          %s467 = int_to_ptr.vmem [resolvable:$true] %s466
          %472 = dma.hbm_to_vmem [thread:$0]  %s465, 256, %s467, %s456, 64, 64, 4
        $region64: #{_forward.1} parent=55 // pred_fallthru
          _
        // Predicated region
        $region65: #{_forward.1} parent=55 // pred_check
          %p473 = pneg %p102
        $region66: #{_forward.1} parent=55 // pred_check_branch
          %475 = sbr.rel (%p473) target = $region68
        $region67: #{_forward.1} parent=55 // pred_region
          %s476 = sand.u32 %s30, 1
          %s477 = scalar_lea.sflag [#allocation6], %s476
          %s478 = sand.u32 %s92, 1
          %s479 = smul.addr %s478, 16
          %s480 = scalar_lea.vmem [#allocation5], %s479
          %s481 = smul.u32 4, %s30
          %s483 = ssub.s32 256, 256
          %484 = vsyncadd %s477, %s483
          %s485 = smul.addr %s481, 64
          %s486 = scalar_lea.hbm %s2, %s485
          %s487 = sshll.u32 %s480, 4
          %s488 = int_to_ptr.vmem [resolvable:$true] %s487
          %493 = dma.hbm_to_vmem [thread:$0]  %s486, 256, %s488, %s477, 64, 64, 4
        $region68: #{_forward.1} parent=55 // pred_fallthru
          _
      $region56: #{_forward.1} parent=5 // pred_fallthru
        _
      %p494 = scmp.le.s32.totalorder 1, %s30
      %p495 = scmp.lt.s32.totalorder %s30, 3
      %p496 = pnand %p494, %p495
      %p497 = pneg %p496
      // Predicated region
      $region69: #{_forward.1} parent=5 // pred_check
        _
      $region70: #{_forward.1} parent=5 // pred_check_branch
        %499 = sbr.rel (%p496) target = $region72
      $region71: #{_forward.1} parent=5 // pred_region
        %s500 = ssub.s32 %s30, 1
        %s501 = sand.u32 %s69, 1
        %s502 = scalar_lea.sflag [#allocation3], %s501
        %s503 = sand.u32 %s69, 1
        %s504 = smul.addr %s503, 16
        %s505 = scalar_lea.vmem [#allocation2], %s504
        // Predicated region
        $region73: #{_forward.1} parent=71 // pred_check
          %p506 = pneg %p82
        $region74: #{_forward.1} parent=71 // pred_check_branch
          %508 = sbr.rel (%p506) target = $region76
        $region75: #{_forward.1} parent=71 // pred_region
          %509 = dma.done %s502, 256
        $region76: #{_forward.1} parent=71 // pred_fallthru
          _
        %s510 = sand.u32 %s35, 1
        %s511 = scalar_lea.sflag [#allocation6], %s510
        %s512 = sand.u32 %s95, 1
        %s513 = smul.addr %s512, 16
        %s514 = scalar_lea.vmem [#allocation5], %s513
        // Predicated region
        $region77: #{_forward.1} parent=71 // pred_check
          %p515 = pneg %p108
        $region78: #{_forward.1} parent=71 // pred_check_branch
          %517 = sbr.rel (%p515) target = $region80
        $region79: #{_forward.1} parent=71 // pred_region
          %518 = dma.done %s511, 256
        $region80: #{_forward.1} parent=71 // pred_fallthru
          _
        // Predicated region
        $region81: #{_forward.1} parent=71 // pred_check
          %p519 = pneg %p129
        $region82: #{_forward.1} parent=71 // pred_check_branch
          %521 = sbr.rel (%p519) target = $region84
        $region83: #{_forward.1} parent=71 // pred_region
          %522 = dma.done [#allocation6], 128
        $region84: #{_forward.1} parent=71 // pred_fallthru
          _
        // Predicated region
        $region85: #{_forward.1} parent=71 // pred_check
          %p523 = pneg %p171
        $region86: #{_forward.1} parent=71 // pred_check_branch
          %525 = sbr.rel (%p523) target = $region88
        $region87: #{_forward.1} parent=71 // pred_region
          %526 = dma.done [#allocation9], 1024
        $region88: #{_forward.1} parent=71 // pred_fallthru
          _
        // Predicated region
        $region89: #{_forward.1} parent=71 // pred_check
          %p527 = pneg %p234
        $region90: #{_forward.1} parent=71 // pred_check_branch
          %529 = sbr.rel (%p527) target = $region92
        $region91: #{_forward.1} parent=71 // pred_region
          %530 = dma.done [#allocation9], 1024
        $region92: #{_forward.1} parent=71 // pred_fallthru
          _
        // Predicated region
        $region93: #{_forward.1} parent=71 // pred_check
          %p531 = pneg %p276
        $region94: #{_forward.1} parent=71 // pred_check_branch
          %533 = sbr.rel (%p531) target = $region96
        $region95: #{_forward.1} parent=71 // pred_region
          %534 = dma.done [#allocation12], 1024
        $region96: #{_forward.1} parent=71 // pred_fallthru
          _
        // Predicated region
        $region97: #{_forward.1} parent=71 // pred_check
          %p535 = pneg %p297
        $region98: #{_forward.1} parent=71 // pred_check_branch
          %537 = sbr.rel (%p535) target = $region100
        $region99: #{_forward.1} parent=71 // pred_region
          %538 = dma.done [#allocation12], 1024
        $region100: #{_forward.1} parent=71 // pred_fallthru
          _
        %s539 = smul.u32 4, %s35
        %p540 = scmp.lt.s32.totalorder %s539, 7
        %s541 = scalar_select %p540, %s539, 7
        %s542 = smul.addr %s541, 4
        %s543 = scalar_lea.vmem %s0, %s542
        %p544 = pneg %p56
        %p545 = pneg %p53
        %s546 = sand.u32 %s69, 1
        %s547 = scalar_lea.sflag [#allocation3], %s546
        %s548 = sand.u32 %s69, 1
        %s549 = smul.addr %s548, 16
        %s550 = scalar_lea.vmem [#allocation2], %s549
        %p551 = pneg %p82
        %p552 = pneg %p79
        %s553 = sand.u32 %s35, 1
        %s554 = scalar_lea.sflag [#allocation6], %s553
        %s555 = sand.u32 %s95, 1
        %s556 = smul.addr %s555, 16
        %s557 = scalar_lea.vmem [#allocation5], %s556
        %p558 = pneg %p108
        %p559 = pneg %p105
        %p560 = pneg %p129
        %p561 = pneg %p126
        %p562 = pneg %p150
        %p563 = pneg %p147
        %p564 = pneg %p171
        %p565 = pneg %p168
        %p566 = pneg %p192
        %p567 = pneg %p189
        %p568 = pneg %p213
        %p569 = pneg %p210
        %p570 = pneg %p234
        %p571 = pneg %p231
        %p572 = pneg %p255
        %p573 = pneg %p252
        %p574 = pneg %p276
        %p575 = pneg %p273
        %p576 = pneg %p297
        %p577 = pneg %p294
        %p578 = pneg %p318
        %p579 = pneg %p315
        %p580 = pneg %p344
        %p581 = pneg %p341
        %s582 = sand.u32 %s331, 1
        %s583 = scalar_lea.sflag [#allocation4], %s582
        %s584 = sand.u32 %s331, 1
        %s585 = smul.addr %s584, 32
        %s586 = scalar_lea.vmem [#allocation14], %s585
        %s587 = smul.u32 4, %s35
        %p588 = scmp.lt.s32.totalorder %s587, 7
        %s589 = scalar_select %p588, %s587, 7
        %s590 = smul.addr %s589, 4
        %s591 = scalar_lea.vmem %s0, %s590
        %s592 = smul.u32 4, %s35
        %s593 = smul.u32 4, %s35
        %s594 = smul.u32 4, %s35
        %s595 = smul.u32 4, %s35
        %v597 = vld [vmem:[%s591] sm:$0xf]
        %v598 = vld [vmem:[%s591 + $0x4] sm:$0xf]
        %v599 = vld [vmem:[%s591 + $0x8] sm:$0xf]
        %v600 = vld [vmem:[%s591 + $0xc] sm:$0xf]
        %v601 = vld [vmem:[#allocation7] sm:$0xf]
        %v602 = vld [vmem:[#allocation7 + $0x4] sm:$0xf]
        %v603 = vld [vmem:[%s4] sm:$0x1]
        %v605 = vlaneseq
        %v606 = vshrl.u32 %v605, 7
        %v607 = vsub.s32 0, %v606
        %v608 = vrot.slane %v603, %v607
        %v614 = vunpack.c.l.b16 %v597
        %v615 = vunpack.c.l.b16 %v598
        %v616 = vunpack.c.l.b16 %v599
        %v617 = vunpack.c.l.b16 %v600
        %v618 = vpack.c.b16 %v615, %v614
        %v619 = vpack.c.b16 %v617, %v616
        %v622 = vunpack.c.l.b16 %v601
        %v623 = vunpack.c.l.b16 %v602
        %v624 = vpack.c.b16 %v623, %v622
        %vm626 = vcmask 130048
        %v628 = vsel %vm626, %v618, 0
        %v631 = vsel %vm626, %v619, 0
        %633 = vmatprep.subr.bf16.mxu0 0
        %634 = vmatpush1.bf16.msra.mxu0 %v624
        %635 = vmatprep.subr.bf16.mxu0 0
        %636 = vmatpush1.bf16.msra.mxu0 0
        %637 = vmatprep.subr.bf16.mxu0 0
        %638 = vmatpush1.bf16.msra.mxu0 0
        %639 = vmatprep.subr.bf16.mxu0 0
        %640 = vmatpush1.bf16.msra.mxu0 0
        %641 = vmatprep.subr.bf16.mxu0 0
        %642 = vmatpush1.bf16.msra.mxu0 0
        %643 = vmatprep.subr.bf16.mxu0 0
        %644 = vmatpush1.bf16.msra.mxu0 0
        %645 = vmatprep.subr.bf16.mxu0 0
        %646 = vmatpush1.bf16.msra.mxu0 0
        %647 = vmatprep.subr.bf16.mxu0 0
        %648 = vmatpush1.bf16.msra.mxu0 0
        %649 = vmatprep.subr.bf16.mxu0 0
        %650 = vmatpush1.bf16.msra.mxu0 0
        %651 = vmatprep.subr.bf16.mxu0 0
        %652 = vmatpush1.bf16.msra.mxu0 0
        %653 = vmatprep.subr.bf16.mxu0 0
        %654 = vmatpush1.bf16.msra.mxu0 0
        %655 = vmatprep.subr.bf16.mxu0 0
        %656 = vmatpush1.bf16.msra.mxu0 0
        %657 = vmatprep.subr.bf16.mxu0 0
        %658 = vmatpush1.bf16.msra.mxu0 0
        %659 = vmatprep.subr.bf16.mxu0 0
        %660 = vmatpush1.bf16.msra.mxu0 0
        %661 = vmatprep.subr.bf16.mxu0 0
        %662 = vmatpush1.bf16.msra.mxu0 0
        %663 = vmatprep.subr.bf16.mxu0 0
        %664 = vmatpush1.bf16.msra.mxu0 0
        %665 = vmatprep.mubr.bf16.mxu0 0
        %666 = vmatmul.mubr.bf16.gmra.mrb[0].mxu0 %v628
        %v667 = vpop.f32.mrb[0].mxu0
        %v668 = vadd.f32 %v608, %v667
        %v669 = vpop.f32.mrb[0].mxu0
        %v670 = vpop.f32.mrb[0].mxu0
        %v671 = vadd.f32 %v608, %v670
        %v672 = vpop.f32.mrb[0].mxu0
        %673 = vmatprep.mubr.bf16.mxu0 0
        %674 = vmatmul.mubr.bf16.gmra.mrb[0].mxu0 %v631
        %v675 = vpop.f32.mrb[0].mxu0
        %v676 = vadd.f32 %v608, %v675
        %v677 = vpop.f32.mrb[0].mxu0
        %v678 = vpop.f32.mrb[0].mxu0
        %v679 = vadd.f32 %v608, %v678
        %v680 = vpop.f32.mrb[0].mxu0
        %681 = vdwg.mxu0
        %v682 = vtanh.pop %v668
        %v683 = vtanh.pop %v671
        %v684 = vtanh.pop %v676
        %v685 = vtanh.pop %v679
        %v686 = vpack.c.bf16 %v683, %v682
        %v687 = vpack.c.bf16 %v685, %v684
        %v688 = vld [vmem:[#allocation8] sm:$0xf]
        %v689 = vld [vmem:[#allocation8 + $0x4] sm:$0xf]
        %v690 = vld [vmem:[#allocation8 + $0x8] sm:$0xf]
        %v691 = vld [vmem:[#allocation8 + $0xc] sm:$0xf]
        %v692 = vld [vmem:[#allocation8 + $0x10] sm:$0xf]
        %v693 = vld [vmem:[#allocation8 + $0x14] sm:$0xf]
        %v694 = vld [vmem:[#allocation8 + $0x18] sm:$0xf]
        %v695 = vld [vmem:[#allocation8 + $0x1c] sm:$0xf]
        %v696 = vld [vmem:[#allocation8 + $0x20] sm:$0xf]
        %v697 = vld [vmem:[#allocation8 + $0x24] sm:$0xf]
        %v698 = vld [vmem:[#allocation8 + $0x28] sm:$0xf]
        %v699 = vld [vmem:[#allocation8 + $0x2c] sm:$0xf]
        %v700 = vld [vmem:[#allocation8 + $0x30] sm:$0xf]
        %v701 = vld [vmem:[#allocation8 + $0x34] sm:$0xf]
        %v702 = vld [vmem:[#allocation8 + $0x38] sm:$0xf]
        %v703 = vld [vmem:[#allocation8 + $0x3c] sm:$0xf]
        %v704 = vld [vmem:[%s6] sm:$0x1]
        %v706 = vlaneseq
        %v707 = vshrl.u32 %v706, 7
        %v708 = vsub.s32 0, %v707
        %v709 = vrot.slane %v704, %v708
        %v727 = vunpack.c.l.b16 %v688
        %v728 = vunpack.c.l.b16 %v689
        %v729 = vunpack.c.l.b16 %v690
        %v730 = vunpack.c.l.b16 %v691
        %v731 = vunpack.c.l.b16 %v692
        %v732 = vunpack.c.l.b16 %v693
        %v733 = vunpack.c.l.b16 %v694
        %v734 = vunpack.c.l.b16 %v695
        %v735 = vunpack.c.l.b16 %v696
        %v736 = vunpack.c.l.b16 %v697
        %v737 = vunpack.c.l.b16 %v698
        %v738 = vunpack.c.l.b16 %v699
        %v739 = vunpack.c.l.b16 %v700
        %v740 = vunpack.c.l.b16 %v701
        %v741 = vunpack.c.l.b16 %v702
        %v742 = vunpack.c.l.b16 %v703
        %v743 = vpack.c.b16 %v728, %v727
        %v744 = vpack.c.b16 %v730, %v729
        %v745 = vpack.c.b16 %v732, %v731
        %v746 = vpack.c.b16 %v734, %v733
        %v747 = vpack.c.b16 %v736, %v735
        %v748 = vpack.c.b16 %v738, %v737
        %v749 = vpack.c.b16 %v740, %v739
        %v750 = vpack.c.b16 %v742, %v741
        %759 = vmatprep.subr.bf16.mxu0 0
        %760 = vmatpush1.bf16.msra.mxu0 %v743
        %761 = vmatprep.subr.bf16.mxu0 0
        %762 = vmatpush1.bf16.msra.mxu0 %v744
        %763 = vmatprep.subr.bf16.mxu0 0
        %764 = vmatpush1.bf16.msra.mxu0 %v745
        %765 = vmatprep.subr.bf16.mxu0 0
        %766 = vmatpush1.bf16.msra.mxu0 %v746
        %767 = vmatprep.subr.bf16.mxu0 0
        %768 = vmatpush1.bf16.msra.mxu0 %v747
        %769 = vmatprep.subr.bf16.mxu0 0
        %770 = vmatpush1.bf16.msra.mxu0 %v748
        %771 = vmatprep.subr.bf16.mxu0 0
        %772 = vmatpush1.bf16.msra.mxu0 %v749
        %773 = vmatprep.subr.bf16.mxu0 0
        %774 = vmatpush1.bf16.msra.mxu0 %v750
        %775 = vmatprep.subr.bf16.mxu0 0
        %776 = vmatpush1.bf16.msra.mxu0 0
        %777 = vmatprep.subr.bf16.mxu0 0
        %778 = vmatpush1.bf16.msra.mxu0 0
        %779 = vmatprep.subr.bf16.mxu0 0
        %780 = vmatpush1.bf16.msra.mxu0 0
        %781 = vmatprep.subr.bf16.mxu0 0
        %782 = vmatpush1.bf16.msra.mxu0 0
        %783 = vmatprep.subr.bf16.mxu0 0
        %784 = vmatpush1.bf16.msra.mxu0 0
        %785 = vmatprep.subr.bf16.mxu0 0
        %786 = vmatpush1.bf16.msra.mxu0 0
        %787 = vmatprep.subr.bf16.mxu0 0
        %788 = vmatpush1.bf16.msra.mxu0 0
        %789 = vmatprep.subr.bf16.mxu0 0
        %790 = vmatpush1.bf16.msra.mxu0 0
        %791 = vmatprep.mubr.bf16.mxu0 0
        %792 = vmatmul.mubr.bf16.gmra.mrb[0].mxu0 %v686
        %v793 = vpop.f32.mrb[0].mxu0
        %v794 = vadd.f32 %v709, %v793
        %v795 = vpop.f32.mrb[0].mxu0
        %v796 = vpop.f32.mrb[0].mxu0
        %v797 = vadd.f32 %v709, %v796
        %v798 = vpop.f32.mrb[0].mxu0
        %799 = vmatprep.mubr.bf16.mxu0 0
        %800 = vmatmul.mubr.bf16.gmra.mrb[0].mxu0 %v687
        %v801 = vpop.f32.mrb[0].mxu0
        %v802 = vadd.f32 %v709, %v801
        %v803 = vpop.f32.mrb[0].mxu0
        %v804 = vpop.f32.mrb[0].mxu0
        %v805 = vadd.f32 %v709, %v804
        %v806 = vpop.f32.mrb[0].mxu0
        %807 = vdwg.mxu0
        %v808 = vtanh.pop %v794
        %v809 = vtanh.pop %v797
        %v810 = vtanh.pop %v802
        %v811 = vtanh.pop %v805
        %v812 = vld [vmem:[%s505] sm:$0xf]
        %v813 = vld [vmem:[%s505 + $0x4] sm:$0xf]
        %v814 = vld [vmem:[%s505 + $0x8] sm:$0xf]
        %v815 = vld [vmem:[%s505 + $0xc] sm:$0xf]
        %v816 = vld [vmem:[%s7] sm:$0xf]
        %v817 = vld [vmem:[%s7 + $0x4] sm:$0xf]
        %v818 = vld [vmem:[%s7 + $0x8] sm:$0xf]
        %v819 = vld [vmem:[%s7 + $0xc] sm:$0xf]
        %v820 = vld [vmem:[%s7 + $0x10] sm:$0xf]
        %v821 = vld [vmem:[%s7 + $0x14] sm:$0xf]
        %v822 = vld [vmem:[%s7 + $0x18] sm:$0xf]
        %v823 = vld [vmem:[%s7 + $0x1c] sm:$0xf]
        %v824 = vld [vmem:[%s7 + $0x20] sm:$0xf]
        %v825 = vld [vmem:[%s7 + $0x24] sm:$0xf]
        %v826 = vld [vmem:[%s7 + $0x28] sm:$0xf]
        %v827 = vld [vmem:[%s7 + $0x2c] sm:$0xf]
        %v828 = vld [vmem:[%s7 + $0x30] sm:$0xf]
        %v829 = vld [vmem:[%s7 + $0x34] sm:$0xf]
        %v830 = vld [vmem:[%s7 + $0x38] sm:$0xf]
        %v831 = vld [vmem:[%s7 + $0x3c] sm:$0xf]
        %v832 = vld [vmem:[%s514] sm:$0xf]
        %v833 = vld [vmem:[%s514 + $0x4] sm:$0xf]
        %v834 = vld [vmem:[%s514 + $0x8] sm:$0xf]
        %v835 = vld [vmem:[%s514 + $0xc] sm:$0xf]
        %v836 = vld [vmem:[#allocation10] sm:$0xf]
        %v837 = vld [vmem:[#allocation10 + $0x4] sm:$0xf]
        %v838 = vld [vmem:[#allocation10 + $0x8] sm:$0xf]
        %v839 = vld [vmem:[#allocation10 + $0xc] sm:$0xf]
        %v840 = vld [vmem:[#allocation10 + $0x10] sm:$0xf]
        %v841 = vld [vmem:[#allocation10 + $0x14] sm:$0xf]
        %v842 = vld [vmem:[#allocation10 + $0x18] sm:$0xf]
        %v843 = vld [vmem:[#allocation10 + $0x1c] sm:$0xf]
        %v844 = vld [vmem:[#allocation10 + $0x20] sm:$0xf]
        %v845 = vld [vmem:[#allocation10 + $0x24] sm:$0xf]
        %v846 = vld [vmem:[#allocation10 + $0x28] sm:$0xf]
        %v847 = vld [vmem:[#allocation10 + $0x2c] sm:$0xf]
        %v848 = vld [vmem:[#allocation10 + $0x30] sm:$0xf]
        %v849 = vld [vmem:[#allocation10 + $0x34] sm:$0xf]
        %v850 = vld [vmem:[#allocation10 + $0x38] sm:$0xf]
        %v851 = vld [vmem:[#allocation10 + $0x3c] sm:$0xf]
        %v856 = vunpack.c.l.b16 %v832
        %v857 = vunpack.c.l.b16 %v833
        %v858 = vunpack.c.l.b16 %v834
        %v859 = vunpack.c.l.b16 %v835
        %v860 = vpack.c.b16 %v857, %v856
        %v861 = vpack.c.b16 %v859, %v858
        %v880 = vunpack.c.l.b16 %v836
        %v881 = vunpack.c.l.b16 %v837
        %v882 = vunpack.c.l.b16 %v838
        %v883 = vunpack.c.l.b16 %v839
        %v884 = vunpack.c.l.b16 %v840
        %v885 = vunpack.c.l.b16 %v841
        %v886 = vunpack.c.l.b16 %v842
        %v887 = vunpack.c.l.b16 %v843
        %v888 = vunpack.c.l.b16 %v844
        %v889 = vunpack.c.l.b16 %v845
        %v890 = vunpack.c.l.b16 %v846
        %v891 = vunpack.c.l.b16 %v847
        %v892 = vunpack.c.l.b16 %v848
        %v893 = vunpack.c.l.b16 %v849
        %v894 = vunpack.c.l.b16 %v850
        %v895 = vunpack.c.l.b16 %v851
        %v896 = vpack.c.b16 %v881, %v880
        %v897 = vpack.c.b16 %v883, %v882
        %v898 = vpack.c.b16 %v885, %v884
        %v899 = vpack.c.b16 %v887, %v886
        %v900 = vpack.c.b16 %v889, %v888
        %v901 = vpack.c.b16 %v891, %v890
        %v902 = vpack.c.b16 %v893, %v892
        %v903 = vpack.c.b16 %v895, %v894
        %912 = vmatprep.subr.bf16.mxu0 0
        %913 = vmatpush1.bf16.msra.mxu0 %v896
        %914 = vmatprep.subr.bf16.mxu0 0
        %915 = vmatpush1.bf16.msra.mxu0 %v897
        %916 = vmatprep.subr.bf16.mxu0 0
        %917 = vmatpush1.bf16.msra.mxu0 %v898
        %918 = vmatprep.subr.bf16.mxu0 0
        %919 = vmatpush1.bf16.msra.mxu0 %v899
        %920 = vmatprep.subr.bf16.mxu0 0
        %921 = vmatpush1.bf16.msra.mxu0 %v900
        %922 = vmatprep.subr.bf16.mxu0 0
        %923 = vmatpush1.bf16.msra.mxu0 %v901
        %924 = vmatprep.subr.bf16.mxu0 0
        %925 = vmatpush1.bf16.msra.mxu0 %v902
        %926 = vmatprep.subr.bf16.mxu0 0
        %927 = vmatpush1.bf16.msra.mxu0 %v903
        %928 = vmatprep.subr.bf16.mxu0 0
        %929 = vmatpush1.bf16.msra.mxu0 0
        %930 = vmatprep.subr.bf16.mxu0 0
        %931 = vmatpush1.bf16.msra.mxu0 0
        %932 = vmatprep.subr.bf16.mxu0 0
        %933 = vmatpush1.bf16.msra.mxu0 0
        %934 = vmatprep.subr.bf16.mxu0 0
        %935 = vmatpush1.bf16.msra.mxu0 0
        %936 = vmatprep.subr.bf16.mxu0 0
        %937 = vmatpush1.bf16.msra.mxu0 0
        %938 = vmatprep.subr.bf16.mxu0 0
        %939 = vmatpush1.bf16.msra.mxu0 0
        %940 = vmatprep.subr.bf16.mxu0 0
        %941 = vmatpush1.bf16.msra.mxu0 0
        %942 = vmatprep.subr.bf16.mxu0 0
        %943 = vmatpush1.bf16.msra.mxu0 0
        %944 = vmatprep.mubr.bf16.mxu0 0
        %945 = vmatmul.mubr.bf16.gmra.mrb[0].mxu0 %v860
        %v946 = vpop.f32.mrb[0].mxu0
        %v947 = vadd.f32 0.0, %v946
        %v948 = vpop.f32.mrb[0].mxu0
        %v949 = vpop.f32.mrb[0].mxu0
        %v950 = vadd.f32 0.0, %v949
        %v951 = vpop.f32.mrb[0].mxu0
        %952 = vmatprep.mubr.bf16.mxu0 0
        %953 = vmatmul.mubr.bf16.gmra.mrb[0].mxu0 %v861
        %v954 = vpop.f32.mrb[0].mxu0
        %v955 = vadd.f32 0.0, %v954
        %v956 = vpop.f32.mrb[0].mxu0
        %v957 = vpop.f32.mrb[0].mxu0
        %v958 = vadd.f32 0.0, %v957
        %v959 = vpop.f32.mrb[0].mxu0
        %960 = vdwg.mxu0
        %v965 = vunpack.c.l.b16 %v812
        %v966 = vunpack.c.l.b16 %v813
        %v967 = vunpack.c.l.b16 %v814
        %v968 = vunpack.c.l.b16 %v815
        %v969 = vpack.c.b16 %v966, %v965
        %v970 = vpack.c.b16 %v968, %v967
        %v989 = vunpack.c.l.b16 %v816
        %v990 = vunpack.c.l.b16 %v817
        %v991 = vunpack.c.l.b16 %v818
        %v992 = vunpack.c.l.b16 %v819
        %v993 = vunpack.c.l.b16 %v820
        %v994 = vunpack.c.l.b16 %v821
        %v995 = vunpack.c.l.b16 %v822
        %v996 = vunpack.c.l.b16 %v823
        %v997 = vunpack.c.l.b16 %v824
        %v998 = vunpack.c.l.b16 %v825
        %v999 = vunpack.c.l.b16 %v826
        %v1000 = vunpack.c.l.b16 %v827
        %v1001 = vunpack.c.l.b16 %v828
        %v1002 = vunpack.c.l.b16 %v829
        %v1003 = vunpack.c.l.b16 %v830
        %v1004 = vunpack.c.l.b16 %v831
        %v1005 = vpack.c.b16 %v990, %v989
        %v1006 = vpack.c.b16 %v992, %v991
        %v1007 = vpack.c.b16 %v994, %v993
        %v1008 = vpack.c.b16 %v996, %v995
        %v1009 = vpack.c.b16 %v998, %v997
        %v1010 = vpack.c.b16 %v1000, %v999
        %v1011 = vpack.c.b16 %v1002, %v1001
        %v1012 = vpack.c.b16 %v1004, %v1003
        %1021 = vmatprep.subr.bf16.mxu0 0
        %1022 = vmatpush1.bf16.msra.mxu0 %v1005
        %1023 = vmatprep.subr.bf16.mxu0 0
        %1024 = vmatpush1.bf16.msra.mxu0 %v1006
        %1025 = vmatprep.subr.bf16.mxu0 0
        %1026 = vmatpush1.bf16.msra.mxu0 %v1007
        %1027 = vmatprep.subr.bf16.mxu0 0
        %1028 = vmatpush1.bf16.msra.mxu0 %v1008
        %1029 = vmatprep.subr.bf16.mxu0 0
        %1030 = vmatpush1.bf16.msra.mxu0 %v1009
        %1031 = vmatprep.subr.bf16.mxu0 0
        %1032 = vmatpush1.bf16.msra.mxu0 %v1010
        %1033 = vmatprep.subr.bf16.mxu0 0
        %1034 = vmatpush1.bf16.msra.mxu0 %v1011
        %1035 = vmatprep.subr.bf16.mxu0 0
        %1036 = vmatpush1.bf16.msra.mxu0 %v1012
        %1037 = vmatprep.subr.bf16.mxu0 0
        %1038 = vmatpush1.bf16.msra.mxu0 0
        %1039 = vmatprep.subr.bf16.mxu0 0
        %1040 = vmatpush1.bf16.msra.mxu0 0
        %1041 = vmatprep.subr.bf16.mxu0 0
        %1042 = vmatpush1.bf16.msra.mxu0 0
        %1043 = vmatprep.subr.bf16.mxu0 0
        %1044 = vmatpush1.bf16.msra.mxu0 0
        %1045 = vmatprep.subr.bf16.mxu0 0
        %1046 = vmatpush1.bf16.msra.mxu0 0
        %1047 = vmatprep.subr.bf16.mxu0 0
        %1048 = vmatpush1.bf16.msra.mxu0 0
        %1049 = vmatprep.subr.bf16.mxu0 0
        %1050 = vmatpush1.bf16.msra.mxu0 0
        %1051 = vmatprep.subr.bf16.mxu0 0
        %1052 = vmatpush1.bf16.msra.mxu0 0
        %1053 = vmatprep.mubr.bf16.mxu0 0
        %1054 = vmatmul.mubr.bf16.gmra.mrb[0].mxu0 %v969
        %v1055 = vpop.f32.mrb[0].mxu0
        %v1056 = vadd.f32 %v947, %v1055
        %v1057 = vpop.f32.mrb[0].mxu0
        %v1058 = vpop.f32.mrb[0].mxu0
        %v1059 = vadd.f32 %v950, %v1058
        %v1060 = vpop.f32.mrb[0].mxu0
        %1061 = vmatprep.mubr.bf16.mxu0 0
        %1062 = vmatmul.mubr.bf16.gmra.mrb[0].mxu0 %v970
        %v1063 = vpop.f32.mrb[0].mxu0
        %v1064 = vadd.f32 %v955, %v1063
        %v1065 = vpop.f32.mrb[0].mxu0
        %v1066 = vpop.f32.mrb[0].mxu0
        %v1067 = vadd.f32 %v958, %v1066
        %v1068 = vpop.f32.mrb[0].mxu0
        %1069 = vdwg.mxu0
        %v1070 = vld [vmem:[%s9] sm:$0x1]
        %v1072 = vlaneseq
        %v1073 = vshrl.u32 %v1072, 7
        %v1074 = vsub.s32 0, %v1073
        %v1075 = vrot.slane %v1070, %v1074
        %v1077 = vadd.f32 %v1056, %v1075
        %v1078 = vadd.f32 %v1059, %v1075
        %v1079 = vadd.f32 %v1064, %v1075
        %v1080 = vadd.f32 %v1067, %v1075
        %v1081 = vtanh.pop %v1077
        %v1082 = vtanh.pop %v1078
        %v1083 = vtanh.pop %v1079
        %v1084 = vtanh.pop %v1080
        %v1085 = vpack.c.bf16 %v809, %v808
        %v1086 = vpack.c.bf16 %v811, %v810
        %v1087 = vld [vmem:[#allocation11] sm:$0xf]
        %v1088 = vld [vmem:[#allocation11 + $0x4] sm:$0xf]
        %v1089 = vld [vmem:[#allocation11 + $0x8] sm:$0xf]
        %v1090 = vld [vmem:[#allocation11 + $0xc] sm:$0xf]
        %v1091 = vld [vmem:[#allocation11 + $0x10] sm:$0xf]
        %v1092 = vld [vmem:[#allocation11 + $0x14] sm:$0xf]
        %v1093 = vld [vmem:[#allocation11 + $0x18] sm:$0xf]
        %v1094 = vld [vmem:[#allocation11 + $0x1c] sm:$0xf]
        %v1095 = vld [vmem:[#allocation11 + $0x20] sm:$0xf]
        %v1096 = vld [vmem:[#allocation11 + $0x24] sm:$0xf]
        %v1097 = vld [vmem:[#allocation11 + $0x28] sm:$0xf]
        %v1098 = vld [vmem:[#allocation11 + $0x2c] sm:$0xf]
        %v1099 = vld [vmem:[#allocation11 + $0x30] sm:$0xf]
        %v1100 = vld [vmem:[#allocation11 + $0x34] sm:$0xf]
        %v1101 = vld [vmem:[#allocation11 + $0x38] sm:$0xf]
        %v1102 = vld [vmem:[#allocation11 + $0x3c] sm:$0xf]
        %v1103 = vpack.c.bf16 %v1082, %v1081
        %v1104 = vpack.c.bf16 %v1084, %v1083
        %v1105 = vld [vmem:[#allocation13] sm:$0xf]
        %v1106 = vld [vmem:[#allocation13 + $0x4] sm:$0xf]
        %v1107 = vld [vmem:[#allocation13 + $0x8] sm:$0xf]
        %v1108 = vld [vmem:[#allocation13 + $0xc] sm:$0xf]
        %v1109 = vld [vmem:[#allocation13 + $0x10] sm:$0xf]
        %v1110 = vld [vmem:[#allocation13 + $0x14] sm:$0xf]
        %v1111 = vld [vmem:[#allocation13 + $0x18] sm:$0xf]
        %v1112 = vld [vmem:[#allocation13 + $0x1c] sm:$0xf]
        %v1113 = vld [vmem:[#allocation13 + $0x20] sm:$0xf]
        %v1114 = vld [vmem:[#allocation13 + $0x24] sm:$0xf]
        %v1115 = vld [vmem:[#allocation13 + $0x28] sm:$0xf]
        %v1116 = vld [vmem:[#allocation13 + $0x2c] sm:$0xf]
        %v1117 = vld [vmem:[#allocation13 + $0x30] sm:$0xf]
        %v1118 = vld [vmem:[#allocation13 + $0x34] sm:$0xf]
        %v1119 = vld [vmem:[#allocation13 + $0x38] sm:$0xf]
        %v1120 = vld [vmem:[#allocation13 + $0x3c] sm:$0xf]
        %v1137 = vunpack.c.l.b16 %v1105
        %v1138 = vunpack.c.l.b16 %v1106
        %v1139 = vunpack.c.l.b16 %v1107
        %v1140 = vunpack.c.l.b16 %v1108
        %v1141 = vunpack.c.l.b16 %v1109
        %v1142 = vunpack.c.l.b16 %v1110
        %v1143 = vunpack.c.l.b16 %v1111
        %v1144 = vunpack.c.l.b16 %v1112
        %v1145 = vunpack.c.l.b16 %v1113
        %v1146 = vunpack.c.l.b16 %v1114
        %v1147 = vunpack.c.l.b16 %v1115
        %v1148 = vunpack.c.l.b16 %v1116
        %v1149 = vunpack.c.l.b16 %v1117
        %v1150 = vunpack.c.l.b16 %v1118
        %v1151 = vunpack.c.l.b16 %v1119
        %v1152 = vunpack.c.l.b16 %v1120
        %v1153 = vpack.c.b16 %v1138, %v1137
        %v1154 = vpack.c.b16 %v1140, %v1139
        %v1155 = vpack.c.b16 %v1142, %v1141
        %v1156 = vpack.c.b16 %v1144, %v1143
        %v1157 = vpack.c.b16 %v1146, %v1145
        %v1158 = vpack.c.b16 %v1148, %v1147
        %v1159 = vpack.c.b16 %v1150, %v1149
        %v1160 = vpack.c.b16 %v1152, %v1151
        %1169 = vmatprep.subr.bf16.mxu0 0
        %1170 = vmatpush1.bf16.msra.mxu0 %v1153
        %1171 = vmatprep.subr.bf16.mxu0 0
        %1172 = vmatpush1.bf16.msra.mxu0 %v1154
        %1173 = vmatprep.subr.bf16.mxu0 0
        %1174 = vmatpush1.bf16.msra.mxu0 %v1155
        %1175 = vmatprep.subr.bf16.mxu0 0
        %1176 = vmatpush1.bf16.msra.mxu0 %v1156
        %1177 = vmatprep.subr.bf16.mxu0 0
        %1178 = vmatpush1.bf16.msra.mxu0 %v1157
        %1179 = vmatprep.subr.bf16.mxu0 0
        %1180 = vmatpush1.bf16.msra.mxu0 %v1158
        %1181 = vmatprep.subr.bf16.mxu0 0
        %1182 = vmatpush1.bf16.msra.mxu0 %v1159
        %1183 = vmatprep.subr.bf16.mxu0 0
        %1184 = vmatpush1.bf16.msra.mxu0 %v1160
        %1185 = vmatprep.subr.bf16.mxu0 0
        %1186 = vmatpush1.bf16.msra.mxu0 0
        %1187 = vmatprep.subr.bf16.mxu0 0
        %1188 = vmatpush1.bf16.msra.mxu0 0
        %1189 = vmatprep.subr.bf16.mxu0 0
        %1190 = vmatpush1.bf16.msra.mxu0 0
        %1191 = vmatprep.subr.bf16.mxu0 0
        %1192 = vmatpush1.bf16.msra.mxu0 0
        %1193 = vmatprep.subr.bf16.mxu0 0
        %1194 = vmatpush1.bf16.msra.mxu0 0
        %1195 = vmatprep.subr.bf16.mxu0 0
        %1196 = vmatpush1.bf16.msra.mxu0 0
        %1197 = vmatprep.subr.bf16.mxu0 0
        %1198 = vmatpush1.bf16.msra.mxu0 0
        %1199 = vmatprep.subr.bf16.mxu0 0
        %1200 = vmatpush1.bf16.msra.mxu0 0
        %1201 = vmatprep.mubr.bf16.mxu0 0
        %1202 = vmatmul.mubr.bf16.gmra.mrb[0].mxu0 %v1103
        %v1203 = vpop.f32.mrb[0].mxu0
        %v1204 = vadd.f32 0.0, %v1203
        %v1205 = vpop.f32.mrb[0].mxu0
        %v1206 = vpop.f32.mrb[0].mxu0
        %v1207 = vadd.f32 0.0, %v1206
        %v1208 = vpop.f32.mrb[0].mxu0
        %1209 = vmatprep.mubr.bf16.mxu0 0
        %1210 = vmatmul.mubr.bf16.gmra.mrb[0].mxu0 %v1104
        %v1211 = vpop.f32.mrb[0].mxu0
        %v1212 = vadd.f32 0.0, %v1211
        %v1213 = vpop.f32.mrb[0].mxu0
        %v1214 = vpop.f32.mrb[0].mxu0
        %v1215 = vadd.f32 0.0, %v1214
        %v1216 = vpop.f32.mrb[0].mxu0
        %1217 = vdwg.mxu0
        %v1234 = vunpack.c.l.b16 %v1087
        %v1235 = vunpack.c.l.b16 %v1088
        %v1236 = vunpack.c.l.b16 %v1089
        %v1237 = vunpack.c.l.b16 %v1090
        %v1238 = vunpack.c.l.b16 %v1091
        %v1239 = vunpack.c.l.b16 %v1092
        %v1240 = vunpack.c.l.b16 %v1093
        %v1241 = vunpack.c.l.b16 %v1094
        %v1242 = vunpack.c.l.b16 %v1095
        %v1243 = vunpack.c.l.b16 %v1096
        %v1244 = vunpack.c.l.b16 %v1097
        %v1245 = vunpack.c.l.b16 %v1098
        %v1246 = vunpack.c.l.b16 %v1099
        %v1247 = vunpack.c.l.b16 %v1100
        %v1248 = vunpack.c.l.b16 %v1101
        %v1249 = vunpack.c.l.b16 %v1102
        %v1250 = vpack.c.b16 %v1235, %v1234
        %v1251 = vpack.c.b16 %v1237, %v1236
        %v1252 = vpack.c.b16 %v1239, %v1238
        %v1253 = vpack.c.b16 %v1241, %v1240
        %v1254 = vpack.c.b16 %v1243, %v1242
        %v1255 = vpack.c.b16 %v1245, %v1244
        %v1256 = vpack.c.b16 %v1247, %v1246
        %v1257 = vpack.c.b16 %v1249, %v1248
        %1266 = vmatprep.subr.bf16.mxu0 0
        %1267 = vmatpush1.bf16.msra.mxu0 %v1250
        %1268 = vmatprep.subr.bf16.mxu0 0
        %1269 = vmatpush1.bf16.msra.mxu0 %v1251
        %1270 = vmatprep.subr.bf16.mxu0 0
        %1271 = vmatpush1.bf16.msra.mxu0 %v1252
        %1272 = vmatprep.subr.bf16.mxu0 0
        %1273 = vmatpush1.bf16.msra.mxu0 %v1253
        %1274 = vmatprep.subr.bf16.mxu0 0
        %1275 = vmatpush1.bf16.msra.mxu0 %v1254
        %1276 = vmatprep.subr.bf16.mxu0 0
        %1277 = vmatpush1.bf16.msra.mxu0 %v1255
        %1278 = vmatprep.subr.bf16.mxu0 0
        %1279 = vmatpush1.bf16.msra.mxu0 %v1256
        %1280 = vmatprep.subr.bf16.mxu0 0
        %1281 = vmatpush1.bf16.msra.mxu0 %v1257
        %1282 = vmatprep.subr.bf16.mxu0 0
        %1283 = vmatpush1.bf16.msra.mxu0 0
        %1284 = vmatprep.subr.bf16.mxu0 0
        %1285 = vmatpush1.bf16.msra.mxu0 0
        %1286 = vmatprep.subr.bf16.mxu0 0
        %1287 = vmatpush1.bf16.msra.mxu0 0
        %1288 = vmatprep.subr.bf16.mxu0 0
        %1289 = vmatpush1.bf16.msra.mxu0 0
        %1290 = vmatprep.subr.bf16.mxu0 0
        %1291 = vmatpush1.bf16.msra.mxu0 0
        %1292 = vmatprep.subr.bf16.mxu0 0
        %1293 = vmatpush1.bf16.msra.mxu0 0
        %1294 = vmatprep.subr.bf16.mxu0 0
        %1295 = vmatpush1.bf16.msra.mxu0 0
        %1296 = vmatprep.subr.bf16.mxu0 0
        %1297 = vmatpush1.bf16.msra.mxu0 0
        %1298 = vmatprep.mubr.bf16.mxu0 0
        %1299 = vmatmul.mubr.bf16.gmra.mrb[0].mxu0 %v1085
        %v1300 = vpop.f32.mrb[0].mxu0
        %v1301 = vadd.f32 %v1204, %v1300
        %v1302 = vpop.f32.mrb[0].mxu0
        %v1303 = vpop.f32.mrb[0].mxu0
        %v1304 = vadd.f32 %v1207, %v1303
        %v1305 = vpop.f32.mrb[0].mxu0
        %1306 = vmatprep.mubr.bf16.mxu0 0
        %1307 = vmatmul.mubr.bf16.gmra.mrb[0].mxu0 %v1086
        %v1308 = vpop.f32.mrb[0].mxu0
        %v1309 = vadd.f32 %v1212, %v1308
        %v1310 = vpop.f32.mrb[0].mxu0
        %v1311 = vpop.f32.mrb[0].mxu0
        %v1312 = vadd.f32 %v1215, %v1311
        %v1313 = vpop.f32.mrb[0].mxu0
        %1314 = vdwg.mxu0
        %v1315 = vld [vmem:[%s12] sm:$0x1]
        %v1317 = vlaneseq
        %v1318 = vshrl.u32 %v1317, 7
        %v1319 = vsub.s32 0, %v1318
        %v1320 = vrot.slane %v1315, %v1319
        %v1322 = vadd.f32 %v1301, %v1320
        %v1323 = vadd.f32 %v1304, %v1320
        %v1324 = vadd.f32 %v1309, %v1320
        %v1325 = vadd.f32 %v1312, %v1320
        %v1326 = vtanh.pop %v1322
        %v1327 = vtanh.pop %v1323
        %v1328 = vtanh.pop %v1324
        %v1329 = vtanh.pop %v1325
        %1330 = vst [vmem:[%s586] sm:$0xff] %v1326
        %1331 = vst [vmem:[%s586 + $0x8] sm:$0xff] %v1327
        %1332 = vst [vmem:[%s586 + $0x10] sm:$0xff] %v1328
        %1333 = vst [vmem:[%s586 + $0x18] sm:$0xff] %v1329
        %s1334 = sand.u32 %s331, 1
        %s1335 = scalar_lea.sflag [#allocation4], %s1334
        %s1336 = sand.u32 %s331, 1
        %s1337 = smul.addr %s1336, 32
        %s1338 = scalar_lea.vmem [#allocation14], %s1337
        // Predicated region
        $region101: #{_forward.1} parent=71 // pred_check
          %p1339 = pneg %p341
        $region102: #{_forward.1} parent=71 // pred_check_branch
          %1341 = sbr.rel (%p1339) target = $region104
        $region103: #{_forward.1} parent=71 // pred_region
          %s1342 = smul.u32 4, %s35
          %s1344 = ssub.s32 512, 512
          %1345 = vsyncadd %s1335, %s1344
          %s1346 = smul.addr %s1342, 128
          %s1347 = scalar_lea.hbm %s13, %s1346
          %s1348 = sshll.u32 %s1338, 4
          %s1349 = int_to_ptr.vmem [resolvable:$true] %s1348
          %1354 = dma.vmem_to_hbm [thread:$0]  %s1349, 512, %s1347, %s1335, 128, 128, 8
        $region104: #{_forward.1} parent=71 // pred_fallthru
          _
      $region72: #{_forward.1} parent=5 // pred_fallthru
        _
      %p1355 = scmp.le.s32.totalorder 2, %s30
      // Predicated region
      $region105: #{_forward.1} parent=5 // pred_check
        %p1356 = pneg %p1355
      $region106: #{_forward.1} parent=5 // pred_check_branch
        %1358 = sbr.rel (%p1356) target = $region108
      $region107: #{_forward.1} parent=5 // pred_region
        %s1359 = ssub.s32 %s30, 2
        // Predicated region
        $region109: #{_forward.1} parent=107 // pred_check
          %p1360 = pneg %p347
        $region110: #{_forward.1} parent=107 // pred_check_branch
          %1362 = sbr.rel (%p1360) target = $region112
        $region111: #{_forward.1} parent=107 // pred_region
          %s1363 = sand.u32 %s332, 1
          %s1364 = scalar_lea.sflag [#allocation4], %s1363
          %s1365 = sand.u32 %s332, 1
          %s1366 = smul.addr %s1365, 32
          %s1367 = scalar_lea.vmem [#allocation14], %s1366
          %1368 = dma.done %s1364, 512
        $region112: #{_forward.1} parent=107 // pred_fallthru
          _
      $region108: #{_forward.1} parent=5 // pred_fallthru
        _
    $region6: #{_forward.1} parent=1 // loop_footer
      %s34 = sadd.s32 1, %s30
    $region7: #{_forward.1} parent=1 // loop_footer_branch
      %29 = sbr.rel target = $region3
    $region8: #{_forward.1} parent=1 // loop_exit
      _
    %1369 = vsyncpa [#allocation3], 1
    %s1370 = scalar_lea.sflag [#allocation3], 1
    %1371 = vsyncpa %s1370, 1
    %1372 = vsyncpa [#allocation6], 1
    %s1373 = scalar_lea.sflag [#allocation6], 1
    %1374 = vsyncpa %s1373, 1
    %1375 = vsyncpa [#allocation9], 1
    %1376 = vsyncpa [#allocation12], 1
    %1377 = vsyncpa [#allocation4], 1
    %s1378 = scalar_lea.sflag [#allocation4], 1
    %1379 = vsyncpa %s1378, 1

</llo_original>
